<compile_context>
chip_gen: v7x
topology: tpu7x:2x2x1
jax: 0.10.0
libtpu: 0.0.40
codegen_flags: <defaults>
</compile_context>

<pallas_src>
import functools
import math

import jax
import jax.numpy as jnp
from jax import lax
from jax.experimental import pallas as pl
from jax.experimental.pallas import tpu as pltpu

BBOX_XFORM_CLIP = math.log(1000.0 / 16.0)
_LANE = 128


def _round_up(x, m):
    return (x + m - 1) // m * m


def _pad2(a, rows, cols):
    r, c = a.shape
    return jnp.pad(a, ((0, rows - r), (0, cols - c)))


# --------------------------------------------------------------------------
# Fused Pallas kernel: MLP feature extractor + predictor + post-process math
# --------------------------------------------------------------------------
def _fused_box_head_kernel(x_ref, prop_ref, w6_ref, b6_ref, w7_ref, b7_ref,
                           wh_ref, bh_ref,
                           feat_ref, score_ref, box_ref, acc_ref,
                           *, num_classes, cls_pad):
    """Grid = (row tiles, fc6 K-tiles).  fc6 accumulates over K in acc_ref;
    fc7, the single fused prediction head, softmax and box decode run once on
    the last K step, entirely in VMEM (logits / deltas never touch HBM)."""
    k = pl.program_id(1)

    @pl.when(k == 0)
    def _init():
        acc_ref[...] = jnp.zeros_like(acc_ref)

    # fc6 partial product for this K tile (MXU, f32 accumulation).
    acc_ref[...] += jnp.dot(x_ref[...], w6_ref[...],
                            preferred_element_type=jnp.float32)

    @pl.when(k == pl.num_programs(1) - 1)
    def _finalize():
        CP = cls_pad

        h6 = jnp.maximum(acc_ref[...] + b6_ref[...], 0.0)
        h7 = jnp.maximum(
            jnp.dot(h6.astype(w7_ref.dtype), w7_ref[...],
                    preferred_element_type=jnp.float32) + b7_ref[...], 0.0)
        feat_ref[...] = h7.astype(feat_ref.dtype)

        # Single fused prediction-head matmul.  Column slabs (all 128-lane
        # aligned, no duplicated or interleaved columns):
        #   [0,   CP)  class logits
        #   [CP, 2CP)  dx per class      [2CP, 3CP)  dy per class
        #   [3CP,4CP)  dw per class      [4CP, 5CP)  dh per class
        head = (jnp.dot(h7.astype(wh_ref.dtype), wh_ref[...],
                        preferred_element_type=jnp.float32) + bh_ref[...])

        # ---- softmax over the class-logit slab only (f32, masked pad lanes) --
        logits = head[:, 0:CP]
        lane = lax.broadcasted_iota(jnp.int32, logits.shape, 1)
        masked = jnp.where(lane < num_classes, logits, jnp.float32(-1e30))
        m = jnp.max(masked, axis=-1, keepdims=True)
        e = jnp.exp(masked - m)
        denom = jnp.sum(e, axis=-1, keepdims=True)
        score_ref[...] = e * pl.reciprocal(denom, approx=True)

        # ---- box-coder decode (weights (10,10,5,5)), purely per-lane --------
        prop = prop_ref[...]
        widths = prop[:, 2:3] - prop[:, 0:1] + 1.0
        heights = prop[:, 3:4] - prop[:, 1:2] + 1.0
        ctr_x = prop[:, 0:1] + 0.5 * widths
        ctr_y = prop[:, 1:2] + 0.5 * heights

        dx = head[:, 1 * CP:2 * CP] * jnp.float32(0.1)
        dy = head[:, 2 * CP:3 * CP] * jnp.float32(0.1)
        dw = jnp.minimum(head[:, 3 * CP:4 * CP] * jnp.float32(0.2),
                         BBOX_XFORM_CLIP)
        dh = jnp.minimum(head[:, 4 * CP:5 * CP] * jnp.float32(0.2),
                         BBOX_XFORM_CLIP)

        pred_cx = dx * widths + ctr_x
        pred_cy = dy * heights + ctr_y
        pred_w = jnp.exp(dw) * widths
        pred_h = jnp.exp(dh) * heights

        # Output slabs [x1 | y1 | x2 | y2], each CP lanes (lane-dense stores).
        box_ref[:, 0 * CP:1 * CP] = pred_cx - 0.5 * pred_w
        box_ref[:, 1 * CP:2 * CP] = pred_cy - 0.5 * pred_h
        box_ref[:, 2 * CP:3 * CP] = pred_cx + 0.5 * pred_w - 1.0
        box_ref[:, 3 * CP:4 * CP] = pred_cy + 0.5 * pred_h - 1.0


def fused_box_head(x_flat, proposals_xyxy, params, *, tile_rows=None,
                   k_tile=1024, dtype=jnp.bfloat16, feat_dtype=None):
    """Feature extractor + predictor + post-processor math in one pallas_call.

    Returns (features (R,H), decoded boxes (R,4C), class scores (R,C)).

    tile_rows: MXU row tile.  None -> min(512, round_up(R,128)): big tiles
               amortize the HBM-bound fc6 weight stream; at R>=1024 this gives
               >=2 row tiles so v7x's two TensorCores split the "parallel" row
               axis.  Pass tile_rows=round_up(R,128) for an output-stationary
               fc6 (w6 / x read from HBM exactly once) on single-TC chips.
    k_tile:    fc6 reduction tile (multiple of 128); 1024 keeps grid-step
               overhead low and makes each w6 DMA large.
    dtype:     MXU operand dtype (bf16 default; accumulation stays f32 via
               preferred_element_type).  Use jnp.float32 for bit-accurate
               comparison against f32 references.
    feat_dtype: dtype of the returned features (defaults to `dtype`).
    """
    R, D = x_flat.shape
    H = params["w6"].shape[1]
    C = params["wc"].shape[1]
    CP = _round_up(C, _LANE)          # class slab width
    NH = 5 * CP                       # fused head width: cls + dx,dy,dw,dh

    if feat_dtype is None:
        feat_dtype = dtype

    rp128 = _round_up(max(R, 1), _LANE)
    if tile_rows is None:
        # 256 is a good v5e default, 512 for v6e/v7x; clamp to the row count.
        tile_rows = min(512, rp128)
    tile_rows = _round_up(tile_rows, _LANE)
    Rp = _round_up(R, tile_rows)

    tk = _round_up(min(k_tile, _round_up(D, _LANE)), _LANE)
    Kp = _round_up(D, tk)
    Hp = _round_up(H, _LANE)

    # --- build the fused head weight (one-off, wrapper side) ---------------
    # PyTorch wb column 4k+j = class k, coord j with j in [dx, dy, dw, dh].
    wb4 = params["wb"].reshape(H, C, 4)
    bb4 = params["bb"].reshape(C, 4)

    def padc(a):                      # (H, C) -> (H, CP)
        return jnp.pad(a, ((0, 0), (0, CP - C)))

    def padb(v):                      # (C,) -> (CP,)
        return jnp.pad(v, (0, CP - C))

    w_head = jnp.concatenate(
        [padc(params["wc"]), padc(wb4[:, :, 0]), padc(wb4[:, :, 1]),
         padc(wb4[:, :, 2]), padc(wb4[:, :, 3])], axis=1)        # (H, 5*CP)
    b_head = jnp.concatenate(
        [padb(params["bc"]), padb(bb4[:, 0]), padb(bb4[:, 1]),
         padb(bb4[:, 2]), padb(bb4[:, 3])], axis=0)              # (5*CP,)

    # --- pad everything to MXU / lane friendly shapes (zeros are inert) ----
    xp = _pad2(x_flat, Rp, Kp).astype(dtype)
    propp = _pad2(proposals_xyxy, Rp, 4).astype(jnp.float32)
    w6p = _pad2(params["w6"], Kp, Hp).astype(dtype)
    w7p = _pad2(params["w7"], Hp, Hp).astype(dtype)
    whp = _pad2(w_head, Hp, NH).astype(dtype)
    b6p = _pad2(params["b6"][None, :].astype(jnp.float32), 1, Hp)
    b7p = _pad2(params["b7"][None, :].astype(jnp.float32), 1, Hp)
    bhp = _pad2(b_head[None, :].astype(jnp.float32), 1, NH)

    grid = (Rp // tile_rows, Kp // tk)

    def row(cols):
        return pl.BlockSpec((tile_rows, cols), lambda i, k: (i, 0))

    def const(shape):
        # Grid-invariant operand: constant index_map, never re-DMA'd per step.
        return pl.BlockSpec(shape, lambda i, k: (0, 0))

    # VMEM budget: double-buffered blocks + f32 accumulator, with headroom.
    bpe = jnp.dtype(dtype).itemsize
    fpe = jnp.dtype(feat_dtype).itemsize
    est = (2 * tile_rows * tk * bpe            # pooled-feature blocks
           + 2 * tile_rows * _LANE * 4         # proposals (lane padded)
           + 2 * tk * Hp * bpe                 # fc6 weight blocks
           + 2 * Hp * Hp * bpe                 # fc7 weight
           + 2 * Hp * NH * bpe                 # fused head weight
           + 2 * 8 * (2 * Hp + NH) * 4         # biases (sublane padded)
           + 2 * tile_rows * Hp * fpe          # features out
           + 2 * tile_rows * CP * 4            # scores out
           + 2 * tile_rows * 4 * CP * 4        # boxes out
           + tile_rows * Hp * 4)               # fc6 accumulator scratch
    vmem_limit = min(max(int(est * 1.3) + (2 << 20), 32 << 20), 64 << 20)

    featp, scorep, boxp = pl.pallas_call(
        functools.partial(_fused_box_head_kernel, num_classes=C, cls_pad=CP),
        grid=grid,
        in_specs=[
            pl.BlockSpec((tile_rows, tk), lambda i, k: (i, k)),   # pooled feats
            row(4),                                               # proposals
            pl.BlockSpec((tk, Hp), lambda i, k: (k, 0)),          # fc6 W (K-tiled)
            const((1, Hp)),                                       # fc6 b
            const((Hp, Hp)),                                      # fc7 W
            const((1, Hp)),                                       # fc7 b
            const((Hp, NH)),                                      # fused head W
            const((1, NH)),                                       # fused head b
        ],
        out_specs=(row(Hp), row(CP), row(4 * CP)),
        out_shape=(jax.ShapeDtypeStruct((Rp, Hp), feat_dtype),
                   jax.ShapeDtypeStruct((Rp, CP), jnp.float32),
                   jax.ShapeDtypeStruct((Rp, 4 * CP), jnp.float32)),
        scratch_shapes=[pltpu.VMEM((tile_rows, Hp), jnp.float32)],
        compiler_params=pltpu.CompilerParams(
            dimension_semantics=("parallel", "arbitrary"),
            vmem_limit_bytes=vmem_limit),
    )(xp, propp, w6p, b6p, w7p, b7p, whp, bhp)

    # Padded rows (R -> Rp) hold garbage decodes; slice them off here.
    feat = featp[:R, :H]
    scores = scorep[:R, :C]
    x1 = boxp[:R, 0 * CP:0 * CP + C]
    y1 = boxp[:R, 1 * CP:1 * CP + C]
    x2 = boxp[:R, 2 * CP:2 * CP + C]
    y2 = boxp[:R, 3 * CP:3 * CP + C]
    boxes = jnp.stack([x1, y1, x2, y2], axis=-1).reshape(R, 4 * C)
    return feat, boxes, scores


# --------------------------------------------------------------------------
# Glue: ROIAlign pooling (data-dependent bilinear gather) in plain JAX
# --------------------------------------------------------------------------
def roi_align(features, rois, spatial_scale, pooled_size, sampling_ratio):
    """features: (N, C, Hf, Wf) NCHW; rois: (R, 5) [batch_idx, x1, y1, x2, y2].

    Single flat gather per bilinear corner (no (C, P*S, Wf) intermediates).
    TODO(synk): move this gather into a Pallas kernel so pooled rows land
    directly in the fused head's padded (Rp, Kp) layout.
    """
    N, Cch, Hf, Wf = features.shape
    P, S = pooled_size, sampling_ratio
    PS = P * S
    feat_flat = features.reshape(N, Cch, Hf * Wf)

    def one(roi):
        b = roi[0].astype(jnp.int32)
        fmap = feat_flat[b]                       # (C, Hf*Wf)
        x1 = roi[1] * spatial_scale
        y1 = roi[2] * spatial_scale
        x2 = roi[3] * spatial_scale
        y2 = roi[4] * spatial_scale
        roi_w = jnp.maximum(x2 - x1, 1.0)
        roi_h = jnp.maximum(y2 - y1, 1.0)
        idx = jnp.arange(PS, dtype=jnp.float32)
        ys = y1 + (idx + 0.5) * (roi_h / P / S)
        xs = x1 + (idx + 0.5) * (roi_w / P / S)

        y0 = jnp.floor(ys)
        x0 = jnp.floor(xs)
        ly = ys - y0
        lx = xs - x0
        y0i = jnp.clip(y0, 0, Hf - 1).astype(jnp.int32)
        y1i = jnp.clip(y0 + 1, 0, Hf - 1).astype(jnp.int32)
        x0i = jnp.clip(x0, 0, Wf - 1).astype(jnp.int32)
        x1i = jnp.clip(x0 + 1, 0, Wf - 1).astype(jnp.int32)

        flat = jnp.stack([y0i[:, None] * Wf + x0i[None, :],
                          y0i[:, None] * Wf + x1i[None, :],
                          y1i[:, None] * Wf + x0i[None, :],
                          y1i[:, None] * Wf + x1i[None, :]], axis=0)  # (4,PS,PS)
        vals = jnp.take(fmap, flat.reshape(-1), axis=1, mode="clip")
        vals = vals.reshape(Cch, 4, PS, PS)

        wy1 = ly[:, None]
        wy0 = 1.0 - wy1
        wx1 = lx[None, :]
        wx0 = 1.0 - wx1
        w = jnp.stack([wy0 * wx0, wy0 * wx1, wy1 * wx0, wy1 * wx1], axis=0)
        pooled = (vals * w[None]).sum(axis=1)     # (C, PS, PS)
        return pooled.reshape(Cch, P, S, P, S).mean(axis=(2, 4))     # (C, P, P)

    return jax.vmap(one)(rois)                    # (R, C, P, P)


# --------------------------------------------------------------------------
# Full forward (eval mode): x, result, losses(={}) like ROIBoxHead
# --------------------------------------------------------------------------
def roi_box_head_forward(features, rois, params, *, spatial_scale, pooled_size,
                         sampling_ratio, tile_rows=None, k_tile=1024,
                         dtype=jnp.bfloat16, feat_dtype=None):
    # TODO(synk): training path (subsample + losses) not implemented (eval only).
    pooled = roi_align(features, rois, spatial_scale, pooled_size, sampling_ratio)
    R = pooled.shape[0]
    x_flat = pooled.reshape(R, -1).astype(jnp.float32)

    feat, boxes, scores = fused_box_head(
        x_flat, rois[:, 1:], params,
        tile_rows=tile_rows, k_tile=k_tile, dtype=dtype, feat_dtype=feat_dtype)
    return feat, (boxes, scores), {}


# --------------------------------------------------------------------------
# Plain-JAX reference for sanity checking the Pallas kernel
# --------------------------------------------------------------------------
def _reference_head(x_flat, params, proposals_xyxy):
    h6 = jnp.maximum(x_flat @ params["w6"] + params["b6"], 0.0)
    h7 = jnp.maximum(h6 @ params["w7"] + params["b7"], 0.0)
    logits = h7 @ params["wc"] + params["bc"]
    box_reg = h7 @ params["wb"] + params["bb"]

    scores = jax.nn.softmax(logits, axis=-1)
    w = proposals_xyxy[:, 2:3] - proposals_xyxy[:, 0:1] + 1.0
    h = proposals_xyxy[:, 3:4] - proposals_xyxy[:, 1:2] + 1.0
    cx = proposals_xyxy[:, 0:1] + 0.5 * w
    cy = proposals_xyxy[:, 1:2] + 0.5 * h
    dx = box_reg[:, 0::4] / 10.0
    dy = box_reg[:, 1::4] / 10.0
    dw = jnp.minimum(box_reg[:, 2::4] / 5.0, BBOX_XFORM_CLIP)
    dh = jnp.minimum(box_reg[:, 3::4] / 5.0, BBOX_XFORM_CLIP)
    pcx = dx * w + cx
    pcy = dy * h + cy
    pw = jnp.exp(dw) * w
    ph = jnp.exp(dh) * h
    boxes = jnp.stack([pcx - 0.5 * pw, pcy - 0.5 * ph,
                       pcx + 0.5 * pw - 1.0, pcy + 0.5 * ph - 1.0],
                      axis=-1).reshape(box_reg.shape[0], -1)
    return h7, boxes, scores


if __name__ == "__main__":
    key = jax.random.PRNGKey(0)
    k_feat, k_box, k_w6, k_w7, k_wc, k_wb = jax.random.split(key, 6)

    # Small, config-consistent shapes:
    #   2 images, 16 input channels, 16x16 feature map, pooled 4x4,
    #   representation size 128, 4 classes, 8 proposals per image.
    N, Cin, Hf, Wf = 2, 16, 16, 16
    IMG = 64                    # image size -> spatial_scale = Hf / IMG = 0.25
    POOL, SR = 4, 2
    REP = 128
    NUM_CLASSES = 4
    ROIS_PER_IMG = 8
    R = N * ROIS_PER_IMG
    D_IN = Cin * POOL * POOL    # 256

    features = jax.random.normal(k_feat, (N, Cin, Hf, Wf), dtype=jnp.float32)

    # proposals: x1,y1 in [0,40), w,h in [8,24) -> valid boxes in a 64x64 image
    xy = jax.random.uniform(k_box, (R, 2), minval=0.0, maxval=40.0)
    wh = jax.random.uniform(jax.random.fold_in(k_box, 1), (R, 2),
                            minval=8.0, maxval=24.0)
    boxes_xyxy = jnp.concatenate([xy, xy + wh], axis=-1)
    batch_idx = jnp.repeat(jnp.arange(N, dtype=jnp.float32), ROIS_PER_IMG)[:, None]
    rois = jnp.concatenate([batch_idx, boxes_xyxy], axis=-1)   # (R, 5)

    params = {
        "w6": 0.02 * jax.random.normal(k_w6, (D_IN, REP), dtype=jnp.float32),
        "b6": jnp.zeros((REP,), jnp.float32),
        "w7": 0.02 * jax.random.normal(k_w7, (REP, REP), dtype=jnp.float32),
        "b7": jnp.zeros((REP,), jnp.float32),
        "wc": 0.02 * jax.random.normal(k_wc, (REP, NUM_CLASSES), dtype=jnp.float32),
        "bc": jnp.zeros((NUM_CLASSES,), jnp.float32),
        "wb": 0.02 * jax.random.normal(k_wb, (REP, 4 * NUM_CLASSES), dtype=jnp.float32),
        "bb": jnp.zeros((4 * NUM_CLASSES,), jnp.float32),
    }

    # --- f32 path: tight check against the plain-JAX reference -------------
    feat, (dec_boxes, scores), losses = roi_box_head_forward(
        features, rois, params,
        spatial_scale=Hf / IMG, pooled_size=POOL, sampling_ratio=SR,
        dtype=jnp.float32)
    jax.block_until_ready((feat, dec_boxes, scores))

    pooled = roi_align(features, rois, Hf / IMG, POOL, SR)
    x_flat = pooled.reshape(R, -1)
    rf, rboxes, rscores = _reference_head(x_flat, params, rois[:, 1:])
    assert feat.shape == rf.shape and dec_boxes.shape == rboxes.shape
    assert scores.shape == rscores.shape
    assert jnp.allclose(feat, rf, atol=1e-4, rtol=1e-4)
    assert jnp.allclose(dec_boxes, rboxes, atol=1e-3, rtol=1e-3)
    assert jnp.allclose(scores, rscores, atol=2e-3, rtol=2e-3)
    assert losses == {}

    # --- default bf16 path (production default on v6e/v7x): loose check ----
    featb, (boxesb, scoresb), _ = roi_box_head_forward(
        features, rois, params,
        spatial_scale=Hf / IMG, pooled_size=POOL, sampling_ratio=SR)
    jax.block_until_ready((featb, boxesb, scoresb))
    assert featb.dtype == jnp.bfloat16
    assert bool(jnp.isfinite(boxesb).all()) and bool(jnp.isfinite(scoresb).all())
    assert jnp.allclose(scoresb, rscores, atol=5e-2)
    assert jnp.allclose(boxesb, rboxes, atol=1.0)

    print("KERNEL_OK")
</pallas_src>

<mosaic_0001>
module attributes {stable_mosaic.version = 11 : i64} {
  func.func @_fused_box_head_kernel(%arg0: i32, %arg1: i32, %arg2: memref<128x256xf32, #tpu.memory_space<vmem>>, %arg3: memref<128x4xf32, #tpu.memory_space<vmem>>, %arg4: memref<256x128xf32, #tpu.memory_space<vmem>>, %arg5: memref<1x128xf32, #tpu.memory_space<vmem>>, %arg6: memref<128x128xf32, #tpu.memory_space<vmem>>, %arg7: memref<1x128xf32, #tpu.memory_space<vmem>>, %arg8: memref<128x640xf32, #tpu.memory_space<vmem>>, %arg9: memref<1x640xf32, #tpu.memory_space<vmem>>, %arg10: memref<128x128xf32, #tpu.memory_space<vmem>>, %arg11: memref<128x128xf32, #tpu.memory_space<vmem>>, %arg12: memref<128x512xf32, #tpu.memory_space<vmem>>, %arg13: memref<128x128xf32, #tpu.memory_space<vmem>>) attributes {dimension_semantics = [#tpu.dimension_semantics<parallel>, #tpu.dimension_semantics<arbitrary>], iteration_bounds = array<i64: 1, 1>, scalar_prefetch = 0 : i64, scratch_operands = 1 : i64, tpu.core_type = #tpu.core_type<tc>, window_params = [{transform_indices = @transform_0, window_bounds = array<i64: 128, 256>}, {transform_indices = @transform_1, window_bounds = array<i64: 128, 4>}, {transform_indices = @transform_2, window_bounds = array<i64: 256, 128>}, {pipeline_mode = #tpu.pipeline_mode<synchronous>, transform_indices = @transform_3, window_bounds = array<i64: 1, 128>}, {pipeline_mode = #tpu.pipeline_mode<synchronous>, transform_indices = @transform_4, window_bounds = array<i64: 128, 128>}, {pipeline_mode = #tpu.pipeline_mode<synchronous>, transform_indices = @transform_5, window_bounds = array<i64: 1, 128>}, {pipeline_mode = #tpu.pipeline_mode<synchronous>, transform_indices = @transform_6, window_bounds = array<i64: 128, 640>}, {pipeline_mode = #tpu.pipeline_mode<synchronous>, transform_indices = @transform_7, window_bounds = array<i64: 1, 640>}, {transform_indices = @transform_8, window_bounds = array<i64: 128, 128>}, {transform_indices = @transform_9, window_bounds = array<i64: 128, 128>}, {transform_indices = @transform_10, window_bounds = array<i64: 128, 512>}]} {
    %c0_i32 = arith.constant 0 : i32
    %0 = arith.cmpi eq, %arg1, %c0_i32 : i32
    %1 = arith.extui %0 : i1 to i32
    %c0_i32_0 = arith.constant 0 : i32
    %2 = arith.cmpi ne, %1, %c0_i32_0 : i32
    scf.if %2 {
      %cst_10 = arith.constant 0.000000e+00 : f32
      %12 = vector.broadcast %cst_10 : f32 to vector<128x128xf32>
      %c0_11 = arith.constant 0 : index
      %c0_12 = arith.constant 0 : index
      %13 = vector.load %arg13[%c0_11, %c0_12] : memref<128x128xf32, #tpu.memory_space<vmem>>, vector<128x128xf32>
      tpu.vector_store %arg13[%c0_11, %c0_12], %12 {strides = array<i32>} : memref<128x128xf32, #tpu.memory_space<vmem>>, vector<128x128xf32>,
    } else {
    }
    %c0 = arith.constant 0 : index
    %c0_1 = arith.constant 0 : index
    %3 = vector.load %arg13[%c0, %c0_1] : memref<128x128xf32, #tpu.memory_space<vmem>>, vector<128x128xf32>
    %c0_2 = arith.constant 0 : index
    %c0_3 = arith.constant 0 : index
    %4 = vector.load %arg2[%c0_2, %c0_3] : memref<128x256xf32, #tpu.memory_space<vmem>>, vector<128x256xf32>
    %c0_4 = arith.constant 0 : index
    %c0_5 = arith.constant 0 : index
    %5 = vector.load %arg4[%c0_4, %c0_5] : memref<256x128xf32, #tpu.memory_space<vmem>>, vector<256x128xf32>
    %cst = arith.constant dense<0.000000e+00> : vector<128x128xf32>
    %6 = tpu.matmul %4, %5, %cst {dimension_numbers = #tpu.dot_dimension_numbers<[1], [0], [0], [1], [0, 0, 1, 1], [], []>} : vector<128x256xf32>, vector<256x128xf32>, vector<128x128xf32> -> vector<128x128xf32>
    %7 = arith.addf %3, %6 : vector<128x128xf32>
    %c0_6 = arith.constant 0 : index
    %c0_7 = arith.constant 0 : index
    %8 = vector.load %arg13[%c0_6, %c0_7] : memref<128x128xf32, #tpu.memory_space<vmem>>, vector<128x128xf32>
    tpu.vector_store %arg13[%c0_6, %c0_7], %7 {strides = array<i32>} : memref<128x128xf32, #tpu.memory_space<vmem>>, vector<128x128xf32>,
    %c0_i32_8 = arith.constant 0 : i32
    %9 = arith.cmpi eq, %arg1, %c0_i32_8 : i32
    %10 = arith.extui %9 : i1 to i32
    %c0_i32_9 = arith.constant 0 : i32
    %11 = arith.cmpi ne, %10, %c0_i32_9 : i32
    scf.if %11 {
      %c0_10 = arith.constant 0 : index
      %c0_11 = arith.constant 0 : index
      %12 = vector.load %arg13[%c0_10, %c0_11] : memref<128x128xf32, #tpu.memory_space<vmem>>, vector<128x128xf32>
      %c0_12 = arith.constant 0 : index
      %c0_13 = arith.constant 0 : index
      %13 = vector.load %arg5[%c0_12, %c0_13] : memref<1x128xf32, #tpu.memory_space<vmem>>, vector<1x128xf32>
      %14 = vector.broadcast %13 : vector<1x128xf32> to vector<128x128xf32>
      %15 = arith.addf %12, %14 : vector<128x128xf32>
      %cst_14 = arith.constant 0.000000e+00 : f32
      %16 = vector.broadcast %cst_14 : f32 to vector<128x128xf32>
      %17 = arith.maximumf %15, %16 : vector<128x128xf32>
      %c0_15 = arith.constant 0 : index
      %c0_16 = arith.constant 0 : index
      %18 = vector.load %arg6[%c0_15, %c0_16] : memref<128x128xf32, #tpu.memory_space<vmem>>, vector<128x128xf32>
      %cst_17 = arith.constant dense<0.000000e+00> : vector<128x128xf32>
      %19 = tpu.matmul %17, %18, %cst_17 {dimension_numbers = #tpu.dot_dimension_numbers<[1], [0], [0], [1], [0, 0, 1, 1], [], []>} : vector<128x128xf32>, vector<128x128xf32>, vector<128x128xf32> -> vector<128x128xf32>
      %c0_18 = arith.constant 0 : index
      %c0_19 = arith.constant 0 : index
      %20 = vector.load %arg7[%c0_18, %c0_19] : memref<1x128xf32, #tpu.memory_space<vmem>>, vector<1x128xf32>
      %21 = vector.broadcast %20 : vector<1x128xf32> to vector<128x128xf32>
      %22 = arith.addf %19, %21 : vector<128x128xf32>
      %cst_20 = arith.constant 0.000000e+00 : f32
      %23 = vector.broadcast %cst_20 : f32 to vector<128x128xf32>
      %24 = arith.maximumf %22, %23 : vector<128x128xf32>
      %c0_21 = arith.constant 0 : index
      %c0_22 = arith.constant 0 : index
      %25 = vector.load %arg10[%c0_21, %c0_22] : memref<128x128xf32, #tpu.memory_space<vmem>>, vector<128x128xf32>
      tpu.vector_store %arg10[%c0_21, %c0_22], %24 {strides = array<i32>} : memref<128x128xf32, #tpu.memory_space<vmem>>, vector<128x128xf32>,
      %c0_23 = arith.constant 0 : index
      %c0_24 = arith.constant 0 : index
      %26 = vector.load %arg8[%c0_23, %c0_24] : memref<128x640xf32, #tpu.memory_space<vmem>>, vector<128x640xf32>
      %cst_25 = arith.constant dense<0.000000e+00> : vector<128x640xf32>
      %27 = tpu.matmul %24, %26, %cst_25 {dimension_numbers = #tpu.dot_dimension_numbers<[1], [0], [0], [1], [0, 0, 1, 1], [], []>} : vector<128x128xf32>, vector<128x640xf32>, vector<128x640xf32> -> vector<128x640xf32>
      %c0_26 = arith.constant 0 : index
      %c0_27 = arith.constant 0 : index
      %28 = vector.load %arg9[%c0_26, %c0_27] : memref<1x640xf32, #tpu.memory_space<vmem>>, vector<1x640xf32>
      %29 = vector.broadcast %28 : vector<1x640xf32> to vector<128x640xf32>
      %30 = arith.addf %27, %29 : vector<128x640xf32>
      %31 = vector.extract_strided_slice %30 {offsets = [0, 0], sizes = [128, 128], strides = [1, 1]} : vector<128x640xf32> to vector<128x128xf32>
      %32 = tpu.iota {dimensions = array<i32: 1>} : vector<128x128xi32>
      %c4_i32 = arith.constant 4 : i32
      %33 = vector.broadcast %c4_i32 : i32 to vector<128x128xi32>
      %34 = arith.cmpi slt, %32, %33 : vector<128x128xi32>
      %cst_28 = arith.constant -1.000000e+30 : f32
      %35 = vector.broadcast %cst_28 : f32 to vector<128x128xf32>
      %36 = arith.select %34, %31, %35 : vector<128x128xi1>, vector<128x128xf32>
      %cst_29 = arith.constant dense<0xFF800000> : vector<128xf32>
      %37 = vector.multi_reduction <maximumf>, %36, %cst_29 [1] : vector<128x128xf32> to vector<128xf32>
      %38 = vector.shape_cast %37 : vector<128xf32> to vector<128x1xf32>
      %39 = vector.broadcast %38 : vector<128x1xf32> to vector<128x128xf32>
      %40 = arith.subf %36, %39 : vector<128x128xf32>
      %41 = math.exp %40 : vector<128x128xf32>
      %cst_30 = arith.constant dense<0.000000e+00> : vector<128xf32>
      %42 = vector.multi_reduction <add>, %41, %cst_30 [1] : vector<128x128xf32> to vector<128xf32>
      %43 = vector.shape_cast %42 : vector<128xf32> to vector<128x1xf32>
      %44 = tpu.reciprocal %43 {approx = true} : vector<128x1xf32> -> vector<128x1xf32>
      %45 = vector.broadcast %44 : vector<128x1xf32> to vector<128x128xf32>
      %46 = arith.mulf %41, %45 : vector<128x128xf32>
      %c0_31 = arith.constant 0 : index
      %c0_32 = arith.constant 0 : index
      %47 = vector.load %arg11[%c0_31, %c0_32] : memref<128x128xf32, #tpu.memory_space<vmem>>, vector<128x128xf32>
      tpu.vector_store %arg11[%c0_31, %c0_32], %46 {strides = array<i32>} : memref<128x128xf32, #tpu.memory_space<vmem>>, vector<128x128xf32>,
      %c0_33 = arith.constant 0 : index
      %c0_34 = arith.constant 0 : index
      %48 = vector.load %arg3[%c0_33, %c0_34] : memref<128x4xf32, #tpu.memory_space<vmem>>, vector<128x4xf32>
      %49 = vector.extract_strided_slice %48 {offsets = [0, 2], sizes = [128, 1], strides = [1, 1]} : vector<128x4xf32> to vector<128x1xf32>
      %50 = vector.extract_strided_slice %48 {offsets = [0, 0], sizes = [128, 1], strides = [1, 1]} : vector<128x4xf32> to vector<128x1xf32>
      %51 = arith.subf %49, %50 : vector<128x1xf32>
      %cst_35 = arith.constant 1.000000e+00 : f32
      %52 = vector.broadcast %cst_35 : f32 to vector<128x1xf32>
      %53 = arith.addf %51, %52 : vector<128x1xf32>
      %54 = vector.extract_strided_slice %48 {offsets = [0, 3], sizes = [128, 1], strides = [1, 1]} : vector<128x4xf32> to vector<128x1xf32>
      %55 = vector.extract_strided_slice %48 {offsets = [0, 1], sizes = [128, 1], strides = [1, 1]} : vector<128x4xf32> to vector<128x1xf32>
      %56 = arith.subf %54, %55 : vector<128x1xf32>
      %cst_36 = arith.constant 1.000000e+00 : f32
      %57 = vector.broadcast %cst_36 : f32 to vector<128x1xf32>
      %58 = arith.addf %56, %57 : vector<128x1xf32>
      %59 = vector.extract_strided_slice %48 {offsets = [0, 0], sizes = [128, 1], strides = [1, 1]} : vector<128x4xf32> to vector<128x1xf32>
      %cst_37 = arith.constant 5.000000e-01 : f32
      %60 = vector.broadcast %cst_37 : f32 to vector<128x1xf32>
      %61 = arith.mulf %60, %53 : vector<128x1xf32>
      %62 = arith.addf %59, %61 : vector<128x1xf32>
      %63 = vector.extract_strided_slice %48 {offsets = [0, 1], sizes = [128, 1], strides = [1, 1]} : vector<128x4xf32> to vector<128x1xf32>
      %cst_38 = arith.constant 5.000000e-01 : f32
      %64 = vector.broadcast %cst_38 : f32 to vector<128x1xf32>
      %65 = arith.mulf %64, %58 : vector<128x1xf32>
      %66 = arith.addf %63, %65 : vector<128x1xf32>
      %67 = vector.extract_strided_slice %30 {offsets = [0, 128], sizes = [128, 128], strides = [1, 1]} : vector<128x640xf32> to vector<128x128xf32>
      %cst_39 = arith.constant 1.000000e-01 : f32
      %68 = vector.broadcast %cst_39 : f32 to vector<128x128xf32>
      %69 = arith.mulf %67, %68 : vector<128x128xf32>
      %70 = vector.extract_strided_slice %30 {offsets = [0, 256], sizes = [128, 128], strides = [1, 1]} : vector<128x640xf32> to vector<128x128xf32>
      %cst_40 = arith.constant 1.000000e-01 : f32
      %71 = vector.broadcast %cst_40 : f32 to vector<128x128xf32>
      %72 = arith.mulf %70, %71 : vector<128x128xf32>
      %73 = vector.extract_strided_slice %30 {offsets = [0, 384], sizes = [128, 128], strides = [1, 1]} : vector<128x640xf32> to vector<128x128xf32>
      %cst_41 = arith.constant 2.000000e-01 : f32
      %74 = vector.broadcast %cst_41 : f32 to vector<128x128xf32>
      %75 = arith.mulf %73, %74 : vector<128x128xf32>
      %cst_42 = arith.constant 4.13516665 : f32
      %76 = vector.broadcast %cst_42 : f32 to vector<128x128xf32>
      %77 = arith.minimumf %75, %76 : vector<128x128xf32>
      %78 = vector.extract_strided_slice %30 {offsets = [0, 512], sizes = [128, 128], strides = [1, 1]} : vector<128x640xf32> to vector<128x128xf32>
      %cst_43 = arith.constant 2.000000e-01 : f32
      %79 = vector.broadcast %cst_43 : f32 to vector<128x128xf32>
      %80 = arith.mulf %78, %79 : vector<128x128xf32>
      %cst_44 = arith.constant 4.13516665 : f32
      %81 = vector.broadcast %cst_44 : f32 to vector<128x128xf32>
      %82 = arith.minimumf %80, %81 : vector<128x128xf32>
      %83 = vector.broadcast %53 : vector<128x1xf32> to vector<128x128xf32>
      %84 = arith.mulf %69, %83 : vector<128x128xf32>
      %85 = vector.broadcast %62 : vector<128x1xf32> to vector<128x128xf32>
      %86 = arith.addf %84, %85 : vector<128x128xf32>
      %87 = vector.broadcast %58 : vector<128x1xf32> to vector<128x128xf32>
      %88 = arith.mulf %72, %87 : vector<128x128xf32>
      %89 = vector.broadcast %66 : vector<128x1xf32> to vector<128x128xf32>
      %90 = arith.addf %88, %89 : vector<128x128xf32>
      %91 = math.exp %77 : vector<128x128xf32>
      %92 = vector.broadcast %53 : vector<128x1xf32> to vector<128x128xf32>
      %93 = arith.mulf %91, %92 : vector<128x128xf32>
      %94 = math.exp %82 : vector<128x128xf32>
      %95 = vector.broadcast %58 : vector<128x1xf32> to vector<128x128xf32>
      %96 = arith.mulf %94, %95 : vector<128x128xf32>
      %cst_45 = arith.constant 5.000000e-01 : f32
      %97 = vector.broadcast %cst_45 : f32 to vector<128x128xf32>
      %98 = arith.mulf %97, %93 : vector<128x128xf32>
      %99 = arith.subf %86, %98 : vector<128x128xf32>
      %c0_46 = arith.constant 0 : index
      %c0_47 = arith.constant 0 : index
      %100 = vector.load %arg12[%c0_46, %c0_47] : memref<128x512xf32, #tpu.memory_space<vmem>>, vector<128x128xf32>
      tpu.vector_store %arg12[%c0_46, %c0_47], %99 {strides = array<i32>} : memref<128x512xf32, #tpu.memory_space<vmem>>, vector<128x128xf32>,
      %cst_48 = arith.constant 5.000000e-01 : f32
      %101 = vector.broadcast %cst_48 : f32 to vector<128x128xf32>
      %102 = arith.mulf %101, %96 : vector<128x128xf32>
      %103 = arith.subf %90, %102 : vector<128x128xf32>
      %c0_49 = arith.constant 0 : index
      %c128 = arith.constant 128 : index
      %104 = vector.load %arg12[%c0_49, %c128] : memref<128x512xf32, #tpu.memory_space<vmem>>, vector<128x128xf32>
      tpu.vector_store %arg12[%c0_49, %c128], %103 {strides = array<i32>} : memref<128x512xf32, #tpu.memory_space<vmem>>, vector<128x128xf32>,
      %cst_50 = arith.constant 5.000000e-01 : f32
      %105 = vector.broadcast %cst_50 : f32 to vector<128x128xf32>
      %106 = arith.mulf %105, %93 : vector<128x128xf32>
      %107 = arith.addf %86, %106 : vector<128x128xf32>
      %cst_51 = arith.constant 1.000000e+00 : f32
      %108 = vector.broadcast %cst_51 : f32 to vector<128x128xf32>
      %109 = arith.subf %107, %108 : vector<128x128xf32>
      %c0_52 = arith.constant 0 : index
      %c256 = arith.constant 256 : index
      %110 = vector.load %arg12[%c0_52, %c256] : memref<128x512xf32, #tpu.memory_space<vmem>>, vector<128x128xf32>
      tpu.vector_store %arg12[%c0_52, %c256], %109 {strides = array<i32>} : memref<128x512xf32, #tpu.memory_space<vmem>>, vector<128x128xf32>,
      %cst_53 = arith.constant 5.000000e-01 : f32
      %111 = vector.broadcast %cst_53 : f32 to vector<128x128xf32>
      %112 = arith.mulf %111, %96 : vector<128x128xf32>
      %113 = arith.addf %90, %112 : vector<128x128xf32>
      %cst_54 = arith.constant 1.000000e+00 : f32
      %114 = vector.broadcast %cst_54 : f32 to vector<128x128xf32>
      %115 = arith.subf %113, %114 : vector<128x128xf32>
      %c0_55 = arith.constant 0 : index
      %c384 = arith.constant 384 : index
      %116 = vector.load %arg12[%c0_55, %c384] : memref<128x512xf32, #tpu.memory_space<vmem>>, vector<128x128xf32>
      tpu.vector_store %arg12[%c0_55, %c384], %115 {strides = array<i32>} : memref<128x512xf32, #tpu.memory_space<vmem>>, vector<128x128xf32>,
    } else {
    }
    return
  }
  func.func @transform_0(%arg0: i32, %arg1: i32) -> (i32, i32) {
    %c0_i32 = arith.constant 0 : i32
    return %arg0, %arg1 : i32, i32
  }
  func.func @transform_1(%arg0: i32, %arg1: i32) -> (i32, i32) {
    %c0_i32 = arith.constant 0 : i32
    %c0_i32_0 = arith.constant 0 : i32
    return %arg0, %c0_i32 : i32, i32
  }
  func.func @transform_2(%arg0: i32, %arg1: i32) -> (i32, i32) {
    %c0_i32 = arith.constant 0 : i32
    %c0_i32_0 = arith.constant 0 : i32
    return %arg1, %c0_i32 : i32, i32
  }
  func.func @transform_3(%arg0: i32, %arg1: i32) -> (i32, i32) {
    %c0_i32 = arith.constant 0 : i32
    %c0_i32_0 = arith.constant 0 : i32
    %c0_i32_1 = arith.constant 0 : i32
    return %c0_i32, %c0_i32_0 : i32, i32
  }
  func.func @transform_4(%arg0: i32, %arg1: i32) -> (i32, i32) {
    %c0_i32 = arith.constant 0 : i32
    %c0_i32_0 = arith.constant 0 : i32
    %c0_i32_1 = arith.constant 0 : i32
    return %c0_i32, %c0_i32_0 : i32, i32
  }
  func.func @transform_5(%arg0: i32, %arg1: i32) -> (i32, i32) {
    %c0_i32 = arith.constant 0 : i32
    %c0_i32_0 = arith.constant 0 : i32
    %c0_i32_1 = arith.constant 0 : i32
    return %c0_i32, %c0_i32_0 : i32, i32
  }
  func.func @transform_6(%arg0: i32, %arg1: i32) -> (i32, i32) {
    %c0_i32 = arith.constant 0 : i32
    %c0_i32_0 = arith.constant 0 : i32
    %c0_i32_1 = arith.constant 0 : i32
    return %c0_i32, %c0_i32_0 : i32, i32
  }
  func.func @transform_7(%arg0: i32, %arg1: i32) -> (i32, i32) {
    %c0_i32 = arith.constant 0 : i32
    %c0_i32_0 = arith.constant 0 : i32
    %c0_i32_1 = arith.constant 0 : i32
    return %c0_i32, %c0_i32_0 : i32, i32
  }
  func.func @transform_8(%arg0: i32, %arg1: i32) -> (i32, i32) {
    %c0_i32 = arith.constant 0 : i32
    %c0_i32_0 = arith.constant 0 : i32
    return %arg0, %c0_i32 : i32, i32
  }
  func.func @transform_9(%arg0: i32, %arg1: i32) -> (i32, i32) {
    %c0_i32 = arith.constant 0 : i32
    %c0_i32_0 = arith.constant 0 : i32
    return %arg0, %c0_i32 : i32, i32
  }
  func.func @transform_10(%arg0: i32, %arg1: i32) -> (i32, i32) {
    %c0_i32 = arith.constant 0 : i32
    %c0_i32_0 = arith.constant 0 : i32
    return %arg0, %c0_i32 : i32, i32
  }
}

</mosaic_0001>

<llo_original>
// kernel: tpu_custom_call.1
$region0: #{tpu_custom_call.1}
  #allocation0 [shape = 'u32[]', space=smem, size = 0x4, offset = 0x4, fixed_abs, tag = 'smem constant byte address 0x4 - core index']
  #allocation1 [shape = 'u32[144,128]{1,0:T(1,128)}', space=vmem, size = 0x12000, scoped, tag = 'internal scratch']
  #allocation2 [shape = 'f32[128,128]{1,0:T(8,128)}', space=vmem, size = 0x10000, scoped, tag = 'scratch operand']
  %s0 = inlined_call_operand.hbm [shape: f32[128,256], index: 0, kind: input, shape index: {}]
  %s1 = inlined_call_operand.vmem [shape: f32[128,4], index: 1, kind: input, shape index: {}]
  %s2 = inlined_call_operand.hbm [shape: f32[256,128], index: 2, kind: input, shape index: {}]
  %s3 = inlined_call_operand.vmem [shape: f32[1,128], index: 3, kind: input, shape index: {}]
  %s4 = inlined_call_operand.vmem [shape: f32[128,128], index: 4, kind: input, shape index: {}]
  %s5 = inlined_call_operand.vmem [shape: f32[1,128], index: 5, kind: input, shape index: {}]
  %s6 = inlined_call_operand.hbm [shape: f32[128,640], index: 6, kind: input, shape index: {}]
  %s7 = inlined_call_operand.vmem [shape: f32[1,640], index: 7, kind: input, shape index: {}]
  %s8 = inlined_call_operand.hbm [shape: f32[128,128], index: 8, kind: output, shape index: {0}]
  %s9 = inlined_call_operand.hbm [shape: f32[128,128], index: 9, kind: output, shape index: {1}]
  %s10 = inlined_call_operand.hbm [shape: f32[128,512], index: 10, kind: output, shape index: {2}]
  %11 = xla_tuple %s8, %s9, %s10
  %s12 = sld [smem:[#allocation0]]
  $region78: #{tpu_custom_call.1} parent=0
    _
  %s14 = ssub.s32 1, %s12
  %s15 = scalar_select 0, %s14, %s12
  $region1: #{tpu_custom_call.1} parent=0
    #allocation3 [shape = 'u8[131072]{0}', space=vmem, size = 0x20000, scoped, tag = 'input window, operand 0, single buffered']
    #allocation4 [shape = 's32[1]{0}', space=sflag, size = 0x4, scoped, tag = 'scoped memory for tpu_custom_call.1']
    #allocation5 [shape = 's32[1]{0}', space=sflag, size = 0x4, scoped, tag = 'scoped memory for tpu_custom_call.1']
    #allocation6 [shape = 'u8[131072]{0}', space=vmem, size = 0x20000, scoped, tag = 'input window, operand 2, single buffered']
    #allocation7 [shape = 's32[1]{0}', space=sflag, size = 0x4, scoped, tag = 'scoped memory for tpu_custom_call.1']
    #allocation8 [shape = 'u8[327680]{0}', space=vmem, size = 0x50000, scoped, tag = 'input window, operand 6, single buffered']
    #allocation9 [shape = 'u8[65536]{0}', space=vmem, size = 0x10000, scoped, tag = 'output window, operand 0, single buffered']
    #allocation10 [shape = 'u8[65536]{0}', space=vmem, size = 0x10000, scoped, tag = 'output window, operand 1, single buffered']
    #allocation11 [shape = 's32[1]{0}', space=sflag, size = 0x4, scoped, tag = 'scoped memory for tpu_custom_call.1']
    #allocation12 [shape = 'u8[262144]{0}', space=vmem, size = 0x40000, scoped, tag = 'output window, operand 2, single buffered']
    %16 = vsyncpa [#allocation4], 0
    %17 = vsyncpa [#allocation7], 0
    %18 = vsyncpa [#allocation5], 0
    %19 = vsyncpa [#allocation11], 0
    // Predicated region
    $region2: #{tpu_custom_call.1} parent=1 // pred_check
      _
    $region3: #{tpu_custom_call.1} parent=1 // pred_check_branch
      %21 = sbr.rel (0) target = $region5
    $region4: #{tpu_custom_call.1} parent=1 // pred_region
      %s23 = ssub.s32 4096, 4096
      %24 = vsyncadd [#allocation4], %s23
      %s25 = sshll.u32 [#allocation3], 4
      %s26 = int_to_ptr.vmem [resolvable:$true] %s25
      %31 = dma.hbm_to_vmem [thread:$0]  %s0, 4096, %s26, [#allocation4], 256, 256, 16
    $region5: #{tpu_custom_call.1} parent=1 // pred_fallthru
      _
    // Predicated region
    $region6: #{tpu_custom_call.1} parent=1 // pred_check
      _
    $region7: #{tpu_custom_call.1} parent=1 // pred_check_branch
      %33 = sbr.rel (0) target = $region9
    $region8: #{tpu_custom_call.1} parent=1 // pred_region
      _
    $region9: #{tpu_custom_call.1} parent=1 // pred_fallthru
      _
    // Predicated region
    $region10: #{tpu_custom_call.1} parent=1 // pred_check
      _
    $region11: #{tpu_custom_call.1} parent=1 // pred_check_branch
      %35 = sbr.rel (0) target = $region13
    $region12: #{tpu_custom_call.1} parent=1 // pred_region
      %s37 = ssub.s32 4096, 4096
      %38 = vsyncadd [#allocation7], %s37
      %s39 = sshll.u32 [#allocation6], 4
      %s40 = int_to_ptr.vmem [resolvable:$true] %s39
      %45 = dma.hbm_to_vmem [thread:$0]  %s2, 4096, %s40, [#allocation7], 128, 128, 8
    $region13: #{tpu_custom_call.1} parent=1 // pred_fallthru
      _
    // Predicated region
    $region14: #{tpu_custom_call.1} parent=1 // pred_check
      _
    $region15: #{tpu_custom_call.1} parent=1 // pred_check_branch
      %47 = sbr.rel (0) target = $region17
    $region16: #{tpu_custom_call.1} parent=1 // pred_region
      _
    $region17: #{tpu_custom_call.1} parent=1 // pred_fallthru
      _
    // Predicated region
    $region18: #{tpu_custom_call.1} parent=1 // pred_check
      _
    $region19: #{tpu_custom_call.1} parent=1 // pred_check_branch
      %49 = sbr.rel (0) target = $region21
    $region20: #{tpu_custom_call.1} parent=1 // pred_region
      _
    $region21: #{tpu_custom_call.1} parent=1 // pred_fallthru
      _
    // Predicated region
    $region22: #{tpu_custom_call.1} parent=1 // pred_check
      _
    $region23: #{tpu_custom_call.1} parent=1 // pred_check_branch
      %51 = sbr.rel (0) target = $region25
    $region24: #{tpu_custom_call.1} parent=1 // pred_region
      _
    $region25: #{tpu_custom_call.1} parent=1 // pred_fallthru
      _
    // Predicated region
    $region26: #{tpu_custom_call.1} parent=1 // pred_check
      _
    $region27: #{tpu_custom_call.1} parent=1 // pred_check_branch
      %53 = sbr.rel (0) target = $region29
    $region28: #{tpu_custom_call.1} parent=1 // pred_region
      %s55 = ssub.s32 10240, 10240
      %56 = vsyncadd [#allocation7], %s55
      %s57 = sshll.u32 [#allocation8], 4
      %s58 = int_to_ptr.vmem [resolvable:$true] %s57
      %63 = dma.hbm_to_vmem [thread:$0]  %s6, 10240, %s58, [#allocation7], 640, 640, 40
    $region29: #{tpu_custom_call.1} parent=1 // pred_fallthru
      _
    // Predicated region
    $region30: #{tpu_custom_call.1} parent=1 // pred_check
      _
    $region31: #{tpu_custom_call.1} parent=1 // pred_check_branch
      %65 = sbr.rel (0) target = $region33
    $region32: #{tpu_custom_call.1} parent=1 // pred_region
      _
    $region33: #{tpu_custom_call.1} parent=1 // pred_fallthru
      _
    // Predicated region
    $region34: #{tpu_custom_call.1} parent=1 // pred_check
      _
    $region35: #{tpu_custom_call.1} parent=1 // pred_check_branch
      %67 = sbr.rel (0) target = $region37
    $region36: #{tpu_custom_call.1} parent=1 // pred_region
      %68 = dma.done [#allocation4], 4096
    $region37: #{tpu_custom_call.1} parent=1 // pred_fallthru
      _
    // Predicated region
    $region38: #{tpu_custom_call.1} parent=1 // pred_check
      _
    $region39: #{tpu_custom_call.1} parent=1 // pred_check_branch
      %70 = sbr.rel (0) target = $region41
    $region40: #{tpu_custom_call.1} parent=1 // pred_region
      %71 = dma.done [#allocation7], 4096
    $region41: #{tpu_custom_call.1} parent=1 // pred_fallthru
      _
    // Predicated region
    $region42: #{tpu_custom_call.1} parent=1 // pred_check
      _
    $region43: #{tpu_custom_call.1} parent=1 // pred_check_branch
      %73 = sbr.rel (0) target = $region45
    $region44: #{tpu_custom_call.1} parent=1 // pred_region
      %74 = dma.done [#allocation7], 10240
    $region45: #{tpu_custom_call.1} parent=1 // pred_fallthru
      _
    %p75 = scmp.eq.s32.totalorder 0, 0
    // Predicated region
    $region46: #{tpu_custom_call.1} parent=1 // pred_check
      %p76 = pneg %p75
    $region47: #{tpu_custom_call.1} parent=1 // pred_check_branch
      %78 = sbr.rel (%p76) target = $region49
    $region48: #{tpu_custom_call.1} parent=1 // pred_region
      %79 = vst [vmem:[#allocation2] sm:$0xff] 0.0
      %80 = vst [vmem:[#allocation2 + $0x8] sm:$0xff] 0.0
      %81 = vst [vmem:[#allocation2 + $0x10] sm:$0xff] 0.0
      %82 = vst [vmem:[#allocation2 + $0x18] sm:$0xff] 0.0
      %83 = vst [vmem:[#allocation2 + $0x20] sm:$0xff] 0.0
      %84 = vst [vmem:[#allocation2 + $0x28] sm:$0xff] 0.0
      %85 = vst [vmem:[#allocation2 + $0x30] sm:$0xff] 0.0
      %86 = vst [vmem:[#allocation2 + $0x38] sm:$0xff] 0.0
      %87 = vst [vmem:[#allocation2 + $0x40] sm:$0xff] 0.0
      %88 = vst [vmem:[#allocation2 + $0x48] sm:$0xff] 0.0
      %89 = vst [vmem:[#allocation2 + $0x50] sm:$0xff] 0.0
      %90 = vst [vmem:[#allocation2 + $0x58] sm:$0xff] 0.0
      %91 = vst [vmem:[#allocation2 + $0x60] sm:$0xff] 0.0
      %92 = vst [vmem:[#allocation2 + $0x68] sm:$0xff] 0.0
      %93 = vst [vmem:[#allocation2 + $0x70] sm:$0xff] 0.0
      %94 = vst [vmem:[#allocation2 + $0x78] sm:$0xff] 0.0
    $region49: #{tpu_custom_call.1} parent=1 // pred_fallthru
      _
    %v95 = vld [vmem:[#allocation2] sm:$0xff]
    %v96 = vld [vmem:[#allocation2 + $0x8] sm:$0xff]
    %v97 = vld [vmem:[#allocation2 + $0x10] sm:$0xff]
    %v98 = vld [vmem:[#allocation2 + $0x18] sm:$0xff]
    %v99 = vld [vmem:[#allocation2 + $0x20] sm:$0xff]
    %v100 = vld [vmem:[#allocation2 + $0x28] sm:$0xff]
    %v101 = vld [vmem:[#allocation2 + $0x30] sm:$0xff]
    %v102 = vld [vmem:[#allocation2 + $0x38] sm:$0xff]
    %v103 = vld [vmem:[#allocation2 + $0x40] sm:$0xff]
    %v104 = vld [vmem:[#allocation2 + $0x48] sm:$0xff]
    %v105 = vld [vmem:[#allocation2 + $0x50] sm:$0xff]
    %v106 = vld [vmem:[#allocation2 + $0x58] sm:$0xff]
    %v107 = vld [vmem:[#allocation2 + $0x60] sm:$0xff]
    %v108 = vld [vmem:[#allocation2 + $0x68] sm:$0xff]
    %v109 = vld [vmem:[#allocation2 + $0x70] sm:$0xff]
    %v110 = vld [vmem:[#allocation2 + $0x78] sm:$0xff]
    %v111 = vld [vmem:[#allocation3] sm:$0xff]
    %v112 = vld [vmem:[#allocation3 + $0x8] sm:$0xff]
    %v113 = vld [vmem:[#allocation3 + $0x10] sm:$0xff]
    %v114 = vld [vmem:[#allocation3 + $0x18] sm:$0xff]
    %v115 = vld [vmem:[#allocation3 + $0x20] sm:$0xff]
    %v116 = vld [vmem:[#allocation3 + $0x28] sm:$0xff]
    %v117 = vld [vmem:[#allocation3 + $0x30] sm:$0xff]
    %v118 = vld [vmem:[#allocation3 + $0x38] sm:$0xff]
    %v119 = vld [vmem:[#allocation3 + $0x40] sm:$0xff]
    %v120 = vld [vmem:[#allocation3 + $0x48] sm:$0xff]
    %v121 = vld [vmem:[#allocation3 + $0x50] sm:$0xff]
    %v122 = vld [vmem:[#allocation3 + $0x58] sm:$0xff]
    %v123 = vld [vmem:[#allocation3 + $0x60] sm:$0xff]
    %v124 = vld [vmem:[#allocation3 + $0x68] sm:$0xff]
    %v125 = vld [vmem:[#allocation3 + $0x70] sm:$0xff]
    %v126 = vld [vmem:[#allocation3 + $0x78] sm:$0xff]
    %v127 = vld [vmem:[#allocation3 + $0x80] sm:$0xff]
    %v128 = vld [vmem:[#allocation3 + $0x88] sm:$0xff]
    %v129 = vld [vmem:[#allocation3 + $0x90] sm:$0xff]
    %v130 = vld [vmem:[#allocation3 + $0x98] sm:$0xff]
    %v131 = vld [vmem:[#allocation3 + $0xa0] sm:$0xff]
    %v132 = vld [vmem:[#allocation3 + $0xa8] sm:$0xff]
    %v133 = vld [vmem:[#allocation3 + $0xb0] sm:$0xff]
    %v134 = vld [vmem:[#allocation3 + $0xb8] sm:$0xff]
    %v135 = vld [vmem:[#allocation3 + $0xc0] sm:$0xff]
    %v136 = vld [vmem:[#allocation3 + $0xc8] sm:$0xff]
    %v137 = vld [vmem:[#allocation3 + $0xd0] sm:$0xff]
    %v138 = vld [vmem:[#allocation3 + $0xd8] sm:$0xff]
    %v139 = vld [vmem:[#allocation3 + $0xe0] sm:$0xff]
    %v140 = vld [vmem:[#allocation3 + $0xe8] sm:$0xff]
    %v141 = vld [vmem:[#allocation3 + $0xf0] sm:$0xff]
    %v142 = vld [vmem:[#allocation3 + $0xf8] sm:$0xff]
    %v143 = vld [vmem:[#allocation6] sm:$0xff]
    %v144 = vld [vmem:[#allocation6 + $0x8] sm:$0xff]
    %v145 = vld [vmem:[#allocation6 + $0x10] sm:$0xff]
    %v146 = vld [vmem:[#allocation6 + $0x18] sm:$0xff]
    %v147 = vld [vmem:[#allocation6 + $0x20] sm:$0xff]
    %v148 = vld [vmem:[#allocation6 + $0x28] sm:$0xff]
    %v149 = vld [vmem:[#allocation6 + $0x30] sm:$0xff]
    %v150 = vld [vmem:[#allocation6 + $0x38] sm:$0xff]
    %v151 = vld [vmem:[#allocation6 + $0x40] sm:$0xff]
    %v152 = vld [vmem:[#allocation6 + $0x48] sm:$0xff]
    %v153 = vld [vmem:[#allocation6 + $0x50] sm:$0xff]
    %v154 = vld [vmem:[#allocation6 + $0x58] sm:$0xff]
    %v155 = vld [vmem:[#allocation6 + $0x60] sm:$0xff]
    %v156 = vld [vmem:[#allocation6 + $0x68] sm:$0xff]
    %v157 = vld [vmem:[#allocation6 + $0x70] sm:$0xff]
    %v158 = vld [vmem:[#allocation6 + $0x78] sm:$0xff]
    %v159 = vld [vmem:[#allocation6 + $0x80] sm:$0xff]
    %v160 = vld [vmem:[#allocation6 + $0x88] sm:$0xff]
    %v161 = vld [vmem:[#allocation6 + $0x90] sm:$0xff]
    %v162 = vld [vmem:[#allocation6 + $0x98] sm:$0xff]
    %v163 = vld [vmem:[#allocation6 + $0xa0] sm:$0xff]
    %v164 = vld [vmem:[#allocation6 + $0xa8] sm:$0xff]
    %v165 = vld [vmem:[#allocation6 + $0xb0] sm:$0xff]
    %v166 = vld [vmem:[#allocation6 + $0xb8] sm:$0xff]
    %v167 = vld [vmem:[#allocation6 + $0xc0] sm:$0xff]
    %v168 = vld [vmem:[#allocation6 + $0xc8] sm:$0xff]
    %v169 = vld [vmem:[#allocation6 + $0xd0] sm:$0xff]
    %v170 = vld [vmem:[#allocation6 + $0xd8] sm:$0xff]
    %v171 = vld [vmem:[#allocation6 + $0xe0] sm:$0xff]
    %v172 = vld [vmem:[#allocation6 + $0xe8] sm:$0xff]
    %v173 = vld [vmem:[#allocation6 + $0xf0] sm:$0xff]
    %v174 = vld [vmem:[#allocation6 + $0xf8] sm:$0xff]
    %175 = vmatprep.subr.mxu0 0.0
    %176 = vmatpush1.msra.mxu0 %v143
    %177 = vmatprep.subr.mxu0 0.0
    %178 = vmatpush1.msra.mxu0 %v144
    %179 = vmatprep.subr.mxu0 0.0
    %180 = vmatpush1.msra.mxu0 %v145
    %181 = vmatprep.subr.mxu0 0.0
    %182 = vmatpush1.msra.mxu0 %v146
    %183 = vmatprep.subr.mxu0 0.0
    %184 = vmatpush1.msra.mxu0 %v147
    %185 = vmatprep.subr.mxu0 0.0
    %186 = vmatpush1.msra.mxu0 %v148
    %187 = vmatprep.subr.mxu0 0.0
    %188 = vmatpush1.msra.mxu0 %v149
    %189 = vmatprep.subr.mxu0 0.0
    %190 = vmatpush1.msra.mxu0 %v150
    %191 = vmatprep.subr.mxu0 0.0
    %192 = vmatpush1.msra.mxu0 %v151
    %193 = vmatprep.subr.mxu0 0.0
    %194 = vmatpush1.msra.mxu0 %v152
    %195 = vmatprep.subr.mxu0 0.0
    %196 = vmatpush1.msra.mxu0 %v153
    %197 = vmatprep.subr.mxu0 0.0
    %198 = vmatpush1.msra.mxu0 %v154
    %199 = vmatprep.subr.mxu0 0.0
    %200 = vmatpush1.msra.mxu0 %v155
    %201 = vmatprep.subr.mxu0 0.0
    %202 = vmatpush1.msra.mxu0 %v156
    %203 = vmatprep.subr.mxu0 0.0
    %204 = vmatpush1.msra.mxu0 %v157
    %205 = vmatprep.subr.mxu0 0.0
    %206 = vmatpush1.msra.mxu0 %v158
    %207 = vmatprep.subr.mxu0 0.0
    %208 = vmatpush1.msra.mxu0 %v159
    %209 = vmatprep.subr.mxu0 0.0
    %210 = vmatpush1.msra.mxu0 %v160
    %211 = vmatprep.subr.mxu0 0.0
    %212 = vmatpush1.msra.mxu0 %v161
    %213 = vmatprep.subr.mxu0 0.0
    %214 = vmatpush1.msra.mxu0 %v162
    %215 = vmatprep.subr.mxu0 0.0
    %216 = vmatpush1.msra.mxu0 %v163
    %217 = vmatprep.subr.mxu0 0.0
    %218 = vmatpush1.msra.mxu0 %v164
    %219 = vmatprep.subr.mxu0 0.0
    %220 = vmatpush1.msra.mxu0 %v165
    %221 = vmatprep.subr.mxu0 0.0
    %222 = vmatpush1.msra.mxu0 %v166
    %223 = vmatprep.subr.mxu0 0.0
    %224 = vmatpush1.msra.mxu0 %v167
    %225 = vmatprep.subr.mxu0 0.0
    %226 = vmatpush1.msra.mxu0 %v168
    %227 = vmatprep.subr.mxu0 0.0
    %228 = vmatpush1.msra.mxu0 %v169
    %229 = vmatprep.subr.mxu0 0.0
    %230 = vmatpush1.msra.mxu0 %v170
    %231 = vmatprep.subr.mxu0 0.0
    %232 = vmatpush1.msra.mxu0 %v171
    %233 = vmatprep.subr.mxu0 0.0
    %234 = vmatpush1.msra.mxu0 %v172
    %235 = vmatprep.subr.mxu0 0.0
    %236 = vmatpush1.msra.mxu0 %v173
    %237 = vmatprep.subr.mxu0 0.0
    %238 = vmatpush1.msra.mxu0 %v174
    %239 = vmatprep.mubr.f32.mxu0 %v112
    %240 = vmatmul.mubr.f32.gmra.mrb[0].mxu0 %v111
    %v241 = vpop.f32.mrb[0].mxu0
    %v242 = vadd.f32 0.0, %v241
    %v243 = vpop.f32.mrb[0].mxu0
    %244 = vmatprep.mubr.f32.mxu0 %v114
    %245 = vmatmul.mubr.f32.gmra.mrb[0].mxu0 %v113
    %v246 = vpop.f32.mrb[0].mxu0
    %v247 = vadd.f32 0.0, %v246
    %v248 = vpop.f32.mrb[0].mxu0
    %249 = vmatprep.mubr.f32.mxu0 %v116
    %250 = vmatmul.mubr.f32.gmra.mrb[0].mxu0 %v115
    %v251 = vpop.f32.mrb[0].mxu0
    %v252 = vadd.f32 0.0, %v251
    %v253 = vpop.f32.mrb[0].mxu0
    %254 = vmatprep.mubr.f32.mxu0 %v118
    %255 = vmatmul.mubr.f32.gmra.mrb[0].mxu0 %v117
    %v256 = vpop.f32.mrb[0].mxu0
    %v257 = vadd.f32 0.0, %v256
    %v258 = vpop.f32.mrb[0].mxu0
    %259 = vmatprep.mubr.f32.mxu0 %v120
    %260 = vmatmul.mubr.f32.gmra.mrb[0].mxu0 %v119
    %v261 = vpop.f32.mrb[0].mxu0
    %v262 = vadd.f32 0.0, %v261
    %v263 = vpop.f32.mrb[0].mxu0
    %264 = vmatprep.mubr.f32.mxu0 %v122
    %265 = vmatmul.mubr.f32.gmra.mrb[0].mxu0 %v121
    %v266 = vpop.f32.mrb[0].mxu0
    %v267 = vadd.f32 0.0, %v266
    %v268 = vpop.f32.mrb[0].mxu0
    %269 = vmatprep.mubr.f32.mxu0 %v124
    %270 = vmatmul.mubr.f32.gmra.mrb[0].mxu0 %v123
    %v271 = vpop.f32.mrb[0].mxu0
    %v272 = vadd.f32 0.0, %v271
    %v273 = vpop.f32.mrb[0].mxu0
    %274 = vmatprep.mubr.f32.mxu0 %v126
    %275 = vmatmul.mubr.f32.gmra.mrb[0].mxu0 %v125
    %v276 = vpop.f32.mrb[0].mxu0
    %v277 = vadd.f32 0.0, %v276
    %v278 = vpop.f32.mrb[0].mxu0
    %279 = vmatprep.mubr.f32.mxu0 %v128
    %280 = vmatmul.mubr.f32.gmra.mrb[0].mxu0 %v127
    %v281 = vpop.f32.mrb[0].mxu0
    %v282 = vadd.f32 0.0, %v281
    %v283 = vpop.f32.mrb[0].mxu0
    %284 = vmatprep.mubr.f32.mxu0 %v130
    %285 = vmatmul.mubr.f32.gmra.mrb[0].mxu0 %v129
    %v286 = vpop.f32.mrb[0].mxu0
    %v287 = vadd.f32 0.0, %v286
    %v288 = vpop.f32.mrb[0].mxu0
    %289 = vmatprep.mubr.f32.mxu0 %v132
    %290 = vmatmul.mubr.f32.gmra.mrb[0].mxu0 %v131
    %v291 = vpop.f32.mrb[0].mxu0
    %v292 = vadd.f32 0.0, %v291
    %v293 = vpop.f32.mrb[0].mxu0
    %294 = vmatprep.mubr.f32.mxu0 %v134
    %295 = vmatmul.mubr.f32.gmra.mrb[0].mxu0 %v133
    %v296 = vpop.f32.mrb[0].mxu0
    %v297 = vadd.f32 0.0, %v296
    %v298 = vpop.f32.mrb[0].mxu0
    %299 = vmatprep.mubr.f32.mxu0 %v136
    %300 = vmatmul.mubr.f32.gmra.mrb[0].mxu0 %v135
    %v301 = vpop.f32.mrb[0].mxu0
    %v302 = vadd.f32 0.0, %v301
    %v303 = vpop.f32.mrb[0].mxu0
    %304 = vmatprep.mubr.f32.mxu0 %v138
    %305 = vmatmul.mubr.f32.gmra.mrb[0].mxu0 %v137
    %v306 = vpop.f32.mrb[0].mxu0
    %v307 = vadd.f32 0.0, %v306
    %v308 = vpop.f32.mrb[0].mxu0
    %309 = vmatprep.mubr.f32.mxu0 %v140
    %310 = vmatmul.mubr.f32.gmra.mrb[0].mxu0 %v139
    %v311 = vpop.f32.mrb[0].mxu0
    %v312 = vadd.f32 0.0, %v311
    %v313 = vpop.f32.mrb[0].mxu0
    %314 = vmatprep.mubr.f32.mxu0 %v142
    %315 = vmatmul.mubr.f32.gmra.mrb[0].mxu0 %v141
    %v316 = vpop.f32.mrb[0].mxu0
    %v317 = vadd.f32 0.0, %v316
    %v318 = vpop.f32.mrb[0].mxu0
    %319 = vdwg.mxu0
    %v320 = vadd.f32 %v95, %v242
    %v321 = vadd.f32 %v96, %v247
    %v322 = vadd.f32 %v97, %v252
    %v323 = vadd.f32 %v98, %v257
    %v324 = vadd.f32 %v99, %v262
    %v325 = vadd.f32 %v100, %v267
    %v326 = vadd.f32 %v101, %v272
    %v327 = vadd.f32 %v102, %v277
    %v328 = vadd.f32 %v103, %v282
    %v329 = vadd.f32 %v104, %v287
    %v330 = vadd.f32 %v105, %v292
    %v331 = vadd.f32 %v106, %v297
    %v332 = vadd.f32 %v107, %v302
    %v333 = vadd.f32 %v108, %v307
    %v334 = vadd.f32 %v109, %v312
    %v335 = vadd.f32 %v110, %v317
    %336 = vst [vmem:[#allocation2] sm:$0xff] %v320
    %337 = vst [vmem:[#allocation2 + $0x8] sm:$0xff] %v321
    %338 = vst [vmem:[#allocation2 + $0x10] sm:$0xff] %v322
    %339 = vst [vmem:[#allocation2 + $0x18] sm:$0xff] %v323
    %340 = vst [vmem:[#allocation2 + $0x20] sm:$0xff] %v324
    %341 = vst [vmem:[#allocation2 + $0x28] sm:$0xff] %v325
    %342 = vst [vmem:[#allocation2 + $0x30] sm:$0xff] %v326
    %343 = vst [vmem:[#allocation2 + $0x38] sm:$0xff] %v327
    %344 = vst [vmem:[#allocation2 + $0x40] sm:$0xff] %v328
    %345 = vst [vmem:[#allocation2 + $0x48] sm:$0xff] %v329
    %346 = vst [vmem:[#allocation2 + $0x50] sm:$0xff] %v330
    %347 = vst [vmem:[#allocation2 + $0x58] sm:$0xff] %v331
    %348 = vst [vmem:[#allocation2 + $0x60] sm:$0xff] %v332
    %349 = vst [vmem:[#allocation2 + $0x68] sm:$0xff] %v333
    %350 = vst [vmem:[#allocation2 + $0x70] sm:$0xff] %v334
    %351 = vst [vmem:[#allocation2 + $0x78] sm:$0xff] %v335
    // Predicated region
    $region50: #{tpu_custom_call.1} parent=1 // pred_check
      %p352 = pneg %p75
    $region51: #{tpu_custom_call.1} parent=1 // pred_check_branch
      %354 = sbr.rel (%p352) target = $region53
    $region52: #{tpu_custom_call.1} parent=1 // pred_region
      %v355 = vld [vmem:[#allocation2] sm:$0xff]
      %v356 = vld [vmem:[#allocation2 + $0x8] sm:$0xff]
      %v357 = vld [vmem:[#allocation2 + $0x10] sm:$0xff]
      %v358 = vld [vmem:[#allocation2 + $0x18] sm:$0xff]
      %v359 = vld [vmem:[#allocation2 + $0x20] sm:$0xff]
      %v360 = vld [vmem:[#allocation2 + $0x28] sm:$0xff]
      %v361 = vld [vmem:[#allocation2 + $0x30] sm:$0xff]
      %v362 = vld [vmem:[#allocation2 + $0x38] sm:$0xff]
      %v363 = vld [vmem:[#allocation2 + $0x40] sm:$0xff]
      %v364 = vld [vmem:[#allocation2 + $0x48] sm:$0xff]
      %v365 = vld [vmem:[#allocation2 + $0x50] sm:$0xff]
      %v366 = vld [vmem:[#allocation2 + $0x58] sm:$0xff]
      %v367 = vld [vmem:[#allocation2 + $0x60] sm:$0xff]
      %v368 = vld [vmem:[#allocation2 + $0x68] sm:$0xff]
      %v369 = vld [vmem:[#allocation2 + $0x70] sm:$0xff]
      %v370 = vld [vmem:[#allocation2 + $0x78] sm:$0xff]
      %v371 = vld [vmem:[%s3] sm:$0x1]
      %v373 = vlaneseq
      %v374 = vshrl.u32 %v373, 7
      %v375 = vsub.s32 0, %v374
      %v376 = vrot.slane %v371, %v375
      %v378 = vadd.f32 %v355, %v376
      %v379 = vadd.f32 %v356, %v376
      %v380 = vadd.f32 %v357, %v376
      %v381 = vadd.f32 %v358, %v376
      %v382 = vadd.f32 %v359, %v376
      %v383 = vadd.f32 %v360, %v376
      %v384 = vadd.f32 %v361, %v376
      %v385 = vadd.f32 %v362, %v376
      %v386 = vadd.f32 %v363, %v376
      %v387 = vadd.f32 %v364, %v376
      %v388 = vadd.f32 %v365, %v376
      %v389 = vadd.f32 %v366, %v376
      %v390 = vadd.f32 %v367, %v376
      %v391 = vadd.f32 %v368, %v376
      %v392 = vadd.f32 %v369, %v376
      %v393 = vadd.f32 %v370, %v376
      %v394 = vmax.f32 %v378, 0.0
      %v395 = vmax.f32 %v379, 0.0
      %v396 = vmax.f32 %v380, 0.0
      %v397 = vmax.f32 %v381, 0.0
      %v398 = vmax.f32 %v382, 0.0
      %v399 = vmax.f32 %v383, 0.0
      %v400 = vmax.f32 %v384, 0.0
      %v401 = vmax.f32 %v385, 0.0
      %v402 = vmax.f32 %v386, 0.0
      %v403 = vmax.f32 %v387, 0.0
      %v404 = vmax.f32 %v388, 0.0
      %v405 = vmax.f32 %v389, 0.0
      %v406 = vmax.f32 %v390, 0.0
      %v407 = vmax.f32 %v391, 0.0
      %v408 = vmax.f32 %v392, 0.0
      %v409 = vmax.f32 %v393, 0.0
      %v410 = vld [vmem:[%s4] sm:$0xff]
      %v411 = vld [vmem:[%s4 + $0x8] sm:$0xff]
      %v412 = vld [vmem:[%s4 + $0x10] sm:$0xff]
      %v413 = vld [vmem:[%s4 + $0x18] sm:$0xff]
      %v414 = vld [vmem:[%s4 + $0x20] sm:$0xff]
      %v415 = vld [vmem:[%s4 + $0x28] sm:$0xff]
      %v416 = vld [vmem:[%s4 + $0x30] sm:$0xff]
      %v417 = vld [vmem:[%s4 + $0x38] sm:$0xff]
      %v418 = vld [vmem:[%s4 + $0x40] sm:$0xff]
      %v419 = vld [vmem:[%s4 + $0x48] sm:$0xff]
      %v420 = vld [vmem:[%s4 + $0x50] sm:$0xff]
      %v421 = vld [vmem:[%s4 + $0x58] sm:$0xff]
      %v422 = vld [vmem:[%s4 + $0x60] sm:$0xff]
      %v423 = vld [vmem:[%s4 + $0x68] sm:$0xff]
      %v424 = vld [vmem:[%s4 + $0x70] sm:$0xff]
      %v425 = vld [vmem:[%s4 + $0x78] sm:$0xff]
      %v426 = vld [vmem:[%s5] sm:$0x1]
      %v428 = vlaneseq
      %v429 = vshrl.u32 %v428, 7
      %v430 = vsub.s32 0, %v429
      %v431 = vrot.slane %v426, %v430
      %433 = vmatprep.subr.mxu0 0.0
      %434 = vmatpush1.msra.mxu0 %v410
      %435 = vmatprep.subr.mxu0 0.0
      %436 = vmatpush1.msra.mxu0 %v411
      %437 = vmatprep.subr.mxu0 0.0
      %438 = vmatpush1.msra.mxu0 %v412
      %439 = vmatprep.subr.mxu0 0.0
      %440 = vmatpush1.msra.mxu0 %v413
      %441 = vmatprep.subr.mxu0 0.0
      %442 = vmatpush1.msra.mxu0 %v414
      %443 = vmatprep.subr.mxu0 0.0
      %444 = vmatpush1.msra.mxu0 %v415
      %445 = vmatprep.subr.mxu0 0.0
      %446 = vmatpush1.msra.mxu0 %v416
      %447 = vmatprep.subr.mxu0 0.0
      %448 = vmatpush1.msra.mxu0 %v417
      %449 = vmatprep.subr.mxu0 0.0
      %450 = vmatpush1.msra.mxu0 %v418
      %451 = vmatprep.subr.mxu0 0.0
      %452 = vmatpush1.msra.mxu0 %v419
      %453 = vmatprep.subr.mxu0 0.0
      %454 = vmatpush1.msra.mxu0 %v420
      %455 = vmatprep.subr.mxu0 0.0
      %456 = vmatpush1.msra.mxu0 %v421
      %457 = vmatprep.subr.mxu0 0.0
      %458 = vmatpush1.msra.mxu0 %v422
      %459 = vmatprep.subr.mxu0 0.0
      %460 = vmatpush1.msra.mxu0 %v423
      %461 = vmatprep.subr.mxu0 0.0
      %462 = vmatpush1.msra.mxu0 %v424
      %463 = vmatprep.subr.mxu0 0.0
      %464 = vmatpush1.msra.mxu0 %v425
      %465 = vmatprep.subr.mxu0 0.0
      %466 = vmatpush1.msra.mxu0 0.0
      %467 = vmatprep.subr.mxu0 0.0
      %468 = vmatpush1.msra.mxu0 0.0
      %469 = vmatprep.subr.mxu0 0.0
      %470 = vmatpush1.msra.mxu0 0.0
      %471 = vmatprep.subr.mxu0 0.0
      %472 = vmatpush1.msra.mxu0 0.0
      %473 = vmatprep.subr.mxu0 0.0
      %474 = vmatpush1.msra.mxu0 0.0
      %475 = vmatprep.subr.mxu0 0.0
      %476 = vmatpush1.msra.mxu0 0.0
      %477 = vmatprep.subr.mxu0 0.0
      %478 = vmatpush1.msra.mxu0 0.0
      %479 = vmatprep.subr.mxu0 0.0
      %480 = vmatpush1.msra.mxu0 0.0
      %481 = vmatprep.subr.mxu0 0.0
      %482 = vmatpush1.msra.mxu0 0.0
      %483 = vmatprep.subr.mxu0 0.0
      %484 = vmatpush1.msra.mxu0 0.0
      %485 = vmatprep.subr.mxu0 0.0
      %486 = vmatpush1.msra.mxu0 0.0
      %487 = vmatprep.subr.mxu0 0.0
      %488 = vmatpush1.msra.mxu0 0.0
      %489 = vmatprep.subr.mxu0 0.0
      %490 = vmatpush1.msra.mxu0 0.0
      %491 = vmatprep.subr.mxu0 0.0
      %492 = vmatpush1.msra.mxu0 0.0
      %493 = vmatprep.subr.mxu0 0.0
      %494 = vmatpush1.msra.mxu0 0.0
      %495 = vmatprep.subr.mxu0 0.0
      %496 = vmatpush1.msra.mxu0 0.0
      %497 = vmatprep.mubr.f32.mxu0 0.0
      %498 = vmatmul.mubr.f32.gmra.mrb[0].mxu0 %v394
      %v499 = vpop.f32.mrb[0].mxu0
      %v500 = vadd.f32 %v431, %v499
      %v501 = vpop.f32.mrb[0].mxu0
      %502 = vmatprep.mubr.f32.mxu0 0.0
      %503 = vmatmul.mubr.f32.gmra.mrb[0].mxu0 %v395
      %v504 = vpop.f32.mrb[0].mxu0
      %v505 = vadd.f32 %v431, %v504
      %v506 = vpop.f32.mrb[0].mxu0
      %507 = vmatprep.mubr.f32.mxu0 0.0
      %508 = vmatmul.mubr.f32.gmra.mrb[0].mxu0 %v396
      %v509 = vpop.f32.mrb[0].mxu0
      %v510 = vadd.f32 %v431, %v509
      %v511 = vpop.f32.mrb[0].mxu0
      %512 = vmatprep.mubr.f32.mxu0 0.0
      %513 = vmatmul.mubr.f32.gmra.mrb[0].mxu0 %v397
      %v514 = vpop.f32.mrb[0].mxu0
      %v515 = vadd.f32 %v431, %v514
      %v516 = vpop.f32.mrb[0].mxu0
      %517 = vmatprep.mubr.f32.mxu0 0.0
      %518 = vmatmul.mubr.f32.gmra.mrb[0].mxu0 %v398
      %v519 = vpop.f32.mrb[0].mxu0
      %v520 = vadd.f32 %v431, %v519
      %v521 = vpop.f32.mrb[0].mxu0
      %522 = vmatprep.mubr.f32.mxu0 0.0
      %523 = vmatmul.mubr.f32.gmra.mrb[0].mxu0 %v399
      %v524 = vpop.f32.mrb[0].mxu0
      %v525 = vadd.f32 %v431, %v524
      %v526 = vpop.f32.mrb[0].mxu0
      %527 = vmatprep.mubr.f32.mxu0 0.0
      %528 = vmatmul.mubr.f32.gmra.mrb[0].mxu0 %v400
      %v529 = vpop.f32.mrb[0].mxu0
      %v530 = vadd.f32 %v431, %v529
      %v531 = vpop.f32.mrb[0].mxu0
      %532 = vmatprep.mubr.f32.mxu0 0.0
      %533 = vmatmul.mubr.f32.gmra.mrb[0].mxu0 %v401
      %v534 = vpop.f32.mrb[0].mxu0
      %v535 = vadd.f32 %v431, %v534
      %v536 = vpop.f32.mrb[0].mxu0
      %537 = vmatprep.mubr.f32.mxu0 0.0
      %538 = vmatmul.mubr.f32.gmra.mrb[0].mxu0 %v402
      %v539 = vpop.f32.mrb[0].mxu0
      %v540 = vadd.f32 %v431, %v539
      %v541 = vpop.f32.mrb[0].mxu0
      %542 = vmatprep.mubr.f32.mxu0 0.0
      %543 = vmatmul.mubr.f32.gmra.mrb[0].mxu0 %v403
      %v544 = vpop.f32.mrb[0].mxu0
      %v545 = vadd.f32 %v431, %v544
      %v546 = vpop.f32.mrb[0].mxu0
      %547 = vmatprep.mubr.f32.mxu0 0.0
      %548 = vmatmul.mubr.f32.gmra.mrb[0].mxu0 %v404
      %v549 = vpop.f32.mrb[0].mxu0
      %v550 = vadd.f32 %v431, %v549
      %v551 = vpop.f32.mrb[0].mxu0
      %552 = vmatprep.mubr.f32.mxu0 0.0
      %553 = vmatmul.mubr.f32.gmra.mrb[0].mxu0 %v405
      %v554 = vpop.f32.mrb[0].mxu0
      %v555 = vadd.f32 %v431, %v554
      %v556 = vpop.f32.mrb[0].mxu0
      %557 = vmatprep.mubr.f32.mxu0 0.0
      %558 = vmatmul.mubr.f32.gmra.mrb[0].mxu0 %v406
      %v559 = vpop.f32.mrb[0].mxu0
      %v560 = vadd.f32 %v431, %v559
      %v561 = vpop.f32.mrb[0].mxu0
      %562 = vmatprep.mubr.f32.mxu0 0.0
      %563 = vmatmul.mubr.f32.gmra.mrb[0].mxu0 %v407
      %v564 = vpop.f32.mrb[0].mxu0
      %v565 = vadd.f32 %v431, %v564
      %v566 = vpop.f32.mrb[0].mxu0
      %567 = vmatprep.mubr.f32.mxu0 0.0
      %568 = vmatmul.mubr.f32.gmra.mrb[0].mxu0 %v408
      %v569 = vpop.f32.mrb[0].mxu0
      %v570 = vadd.f32 %v431, %v569
      %v571 = vpop.f32.mrb[0].mxu0
      %572 = vmatprep.mubr.f32.mxu0 0.0
      %573 = vmatmul.mubr.f32.gmra.mrb[0].mxu0 %v409
      %v574 = vpop.f32.mrb[0].mxu0
      %v575 = vadd.f32 %v431, %v574
      %v576 = vpop.f32.mrb[0].mxu0
      %577 = vdwg.mxu0
      %v578 = vmax.f32 %v500, 0.0
      %v579 = vmax.f32 %v505, 0.0
      %v580 = vmax.f32 %v510, 0.0
      %v581 = vmax.f32 %v515, 0.0
      %v582 = vmax.f32 %v520, 0.0
      %v583 = vmax.f32 %v525, 0.0
      %v584 = vmax.f32 %v530, 0.0
      %v585 = vmax.f32 %v535, 0.0
      %v586 = vmax.f32 %v540, 0.0
      %v587 = vmax.f32 %v545, 0.0
      %v588 = vmax.f32 %v550, 0.0
      %v589 = vmax.f32 %v555, 0.0
      %v590 = vmax.f32 %v560, 0.0
      %v591 = vmax.f32 %v565, 0.0
      %v592 = vmax.f32 %v570, 0.0
      %v593 = vmax.f32 %v575, 0.0
      %594 = vst [vmem:[#allocation9] sm:$0xff] %v578
      %595 = vst [vmem:[#allocation9 + $0x8] sm:$0xff] %v579
      %596 = vst [vmem:[#allocation9 + $0x10] sm:$0xff] %v580
      %597 = vst [vmem:[#allocation9 + $0x18] sm:$0xff] %v581
      %598 = vst [vmem:[#allocation9 + $0x20] sm:$0xff] %v582
      %599 = vst [vmem:[#allocation9 + $0x28] sm:$0xff] %v583
      %600 = vst [vmem:[#allocation9 + $0x30] sm:$0xff] %v584
      %601 = vst [vmem:[#allocation9 + $0x38] sm:$0xff] %v585
      %602 = vst [vmem:[#allocation9 + $0x40] sm:$0xff] %v586
      %603 = vst [vmem:[#allocation9 + $0x48] sm:$0xff] %v587
      %604 = vst [vmem:[#allocation9 + $0x50] sm:$0xff] %v588
      %605 = vst [vmem:[#allocation9 + $0x58] sm:$0xff] %v589
      %606 = vst [vmem:[#allocation9 + $0x60] sm:$0xff] %v590
      %607 = vst [vmem:[#allocation9 + $0x68] sm:$0xff] %v591
      %608 = vst [vmem:[#allocation9 + $0x70] sm:$0xff] %v592
      %609 = vst [vmem:[#allocation9 + $0x78] sm:$0xff] %v593
      %v610 = vld [vmem:[#allocation8] sm:$0xff]
      %v611 = vld [vmem:[#allocation8 + $0x8] sm:$0xff]
      %v612 = vld [vmem:[#allocation8 + $0x10] sm:$0xff]
      %v613 = vld [vmem:[#allocation8 + $0x18] sm:$0xff]
      %v614 = vld [vmem:[#allocation8 + $0x20] sm:$0xff]
      %v615 = vld [vmem:[#allocation8 + $0x28] sm:$0xff]
      %v616 = vld [vmem:[#allocation8 + $0x30] sm:$0xff]
      %v617 = vld [vmem:[#allocation8 + $0x38] sm:$0xff]
      %v618 = vld [vmem:[#allocation8 + $0x40] sm:$0xff]
      %v619 = vld [vmem:[#allocation8 + $0x48] sm:$0xff]
      %v620 = vld [vmem:[#allocation8 + $0x50] sm:$0xff]
      %v621 = vld [vmem:[#allocation8 + $0x58] sm:$0xff]
      %v622 = vld [vmem:[#allocation8 + $0x60] sm:$0xff]
      %v623 = vld [vmem:[#allocation8 + $0x68] sm:$0xff]
      %v624 = vld [vmem:[#allocation8 + $0x70] sm:$0xff]
      %v625 = vld [vmem:[#allocation8 + $0x78] sm:$0xff]
      %v626 = vld [vmem:[#allocation8 + $0x80] sm:$0xff]
      %v627 = vld [vmem:[#allocation8 + $0x88] sm:$0xff]
      %v628 = vld [vmem:[#allocation8 + $0x90] sm:$0xff]
      %v629 = vld [vmem:[#allocation8 + $0x98] sm:$0xff]
      %v630 = vld [vmem:[#allocation8 + $0xa0] sm:$0xff]
      %v631 = vld [vmem:[#allocation8 + $0xa8] sm:$0xff]
      %v632 = vld [vmem:[#allocation8 + $0xb0] sm:$0xff]
      %v633 = vld [vmem:[#allocation8 + $0xb8] sm:$0xff]
      %v634 = vld [vmem:[#allocation8 + $0xc0] sm:$0xff]
      %v635 = vld [vmem:[#allocation8 + $0xc8] sm:$0xff]
      %v636 = vld [vmem:[#allocation8 + $0xd0] sm:$0xff]
      %v637 = vld [vmem:[#allocation8 + $0xd8] sm:$0xff]
      %v638 = vld [vmem:[#allocation8 + $0xe0] sm:$0xff]
      %v639 = vld [vmem:[#allocation8 + $0xe8] sm:$0xff]
      %v640 = vld [vmem:[#allocation8 + $0xf0] sm:$0xff]
      %v641 = vld [vmem:[#allocation8 + $0xf8] sm:$0xff]
      %v642 = vld [vmem:[#allocation8 + $0x100] sm:$0xff]
      %v643 = vld [vmem:[#allocation8 + $0x108] sm:$0xff]
      %v644 = vld [vmem:[#allocation8 + $0x110] sm:$0xff]
      %v645 = vld [vmem:[#allocation8 + $0x118] sm:$0xff]
      %v646 = vld [vmem:[#allocation8 + $0x120] sm:$0xff]
      %v647 = vld [vmem:[#allocation8 + $0x128] sm:$0xff]
      %v648 = vld [vmem:[#allocation8 + $0x130] sm:$0xff]
      %v649 = vld [vmem:[#allocation8 + $0x138] sm:$0xff]
      %v650 = vld [vmem:[#allocation8 + $0x140] sm:$0xff]
      %v651 = vld [vmem:[#allocation8 + $0x148] sm:$0xff]
      %v652 = vld [vmem:[#allocation8 + $0x150] sm:$0xff]
      %v653 = vld [vmem:[#allocation8 + $0x158] sm:$0xff]
      %v654 = vld [vmem:[#allocation8 + $0x160] sm:$0xff]
      %v655 = vld [vmem:[#allocation8 + $0x168] sm:$0xff]
      %v656 = vld [vmem:[#allocation8 + $0x170] sm:$0xff]
      %v657 = vld [vmem:[#allocation8 + $0x178] sm:$0xff]
      %v658 = vld [vmem:[#allocation8 + $0x180] sm:$0xff]
      %v659 = vld [vmem:[#allocation8 + $0x188] sm:$0xff]
      %v660 = vld [vmem:[#allocation8 + $0x190] sm:$0xff]
      %v661 = vld [vmem:[#allocation8 + $0x198] sm:$0xff]
      %v662 = vld [vmem:[#allocation8 + $0x1a0] sm:$0xff]
      %v663 = vld [vmem:[#allocation8 + $0x1a8] sm:$0xff]
      %v664 = vld [vmem:[#allocation8 + $0x1b0] sm:$0xff]
      %v665 = vld [vmem:[#allocation8 + $0x1b8] sm:$0xff]
      %v666 = vld [vmem:[#allocation8 + $0x1c0] sm:$0xff]
      %v667 = vld [vmem:[#allocation8 + $0x1c8] sm:$0xff]
      %v668 = vld [vmem:[#allocation8 + $0x1d0] sm:$0xff]
      %v669 = vld [vmem:[#allocation8 + $0x1d8] sm:$0xff]
      %v670 = vld [vmem:[#allocation8 + $0x1e0] sm:$0xff]
      %v671 = vld [vmem:[#allocation8 + $0x1e8] sm:$0xff]
      %v672 = vld [vmem:[#allocation8 + $0x1f0] sm:$0xff]
      %v673 = vld [vmem:[#allocation8 + $0x1f8] sm:$0xff]
      %v674 = vld [vmem:[#allocation8 + $0x200] sm:$0xff]
      %v675 = vld [vmem:[#allocation8 + $0x208] sm:$0xff]
      %v676 = vld [vmem:[#allocation8 + $0x210] sm:$0xff]
      %v677 = vld [vmem:[#allocation8 + $0x218] sm:$0xff]
      %v678 = vld [vmem:[#allocation8 + $0x220] sm:$0xff]
      %v679 = vld [vmem:[#allocation8 + $0x228] sm:$0xff]
      %v680 = vld [vmem:[#allocation8 + $0x230] sm:$0xff]
      %v681 = vld [vmem:[#allocation8 + $0x238] sm:$0xff]
      %v682 = vld [vmem:[#allocation8 + $0x240] sm:$0xff]
      %v683 = vld [vmem:[#allocation8 + $0x248] sm:$0xff]
      %v684 = vld [vmem:[#allocation8 + $0x250] sm:$0xff]
      %v685 = vld [vmem:[#allocation8 + $0x258] sm:$0xff]
      %v686 = vld [vmem:[#allocation8 + $0x260] sm:$0xff]
      %v687 = vld [vmem:[#allocation8 + $0x268] sm:$0xff]
      %v688 = vld [vmem:[#allocation8 + $0x270] sm:$0xff]
      %v689 = vld [vmem:[#allocation8 + $0x278] sm:$0xff]
      %v690 = vld [vmem:[%s7] sm:$0x1f]
      %v692 = vlaneseq
      %v693 = vshrl.u32 %v692, 7
      %v694 = vsub.s32 0, %v693
      %v695 = vrot.slane %v690, %v694
      %v696 = vlaneseq
      %v697 = vshrl.u32 %v696, 7
      %v698 = vsub.s32 1, %v697
      %v699 = vrot.slane %v690, %v698
      %v700 = vlaneseq
      %v701 = vshrl.u32 %v700, 7
      %v702 = vsub.s32 2, %v701
      %v703 = vrot.slane %v690, %v702
      %v704 = vlaneseq
      %v705 = vshrl.u32 %v704, 7
      %v706 = vsub.s32 3, %v705
      %v707 = vrot.slane %v690, %v706
      %v708 = vlaneseq
      %v709 = vshrl.u32 %v708, 7
      %v710 = vsub.s32 4, %v709
      %v711 = vrot.slane %v690, %v710
      %717 = vmatprep.subr.mxu0 %v611
      %718 = vmatpush1.msra.mxu0 %v610
      %719 = vmatprep.subr.mxu0 %v616
      %720 = vmatpush1.msra.mxu0 %v615
      %721 = vmatprep.subr.mxu0 %v621
      %722 = vmatpush1.msra.mxu0 %v620
      %723 = vmatprep.subr.mxu0 %v626
      %724 = vmatpush1.msra.mxu0 %v625
      %725 = vmatprep.subr.mxu0 %v631
      %726 = vmatpush1.msra.mxu0 %v630
      %727 = vmatprep.subr.mxu0 %v636
      %728 = vmatpush1.msra.mxu0 %v635
      %729 = vmatprep.subr.mxu0 %v641
      %730 = vmatpush1.msra.mxu0 %v640
      %731 = vmatprep.subr.mxu0 %v646
      %732 = vmatpush1.msra.mxu0 %v645
      %733 = vmatprep.subr.mxu0 %v651
      %734 = vmatpush1.msra.mxu0 %v650
      %735 = vmatprep.subr.mxu0 %v656
      %736 = vmatpush1.msra.mxu0 %v655
      %737 = vmatprep.subr.mxu0 %v661
      %738 = vmatpush1.msra.mxu0 %v660
      %739 = vmatprep.subr.mxu0 %v666
      %740 = vmatpush1.msra.mxu0 %v665
      %741 = vmatprep.subr.mxu0 %v671
      %742 = vmatpush1.msra.mxu0 %v670
      %743 = vmatprep.subr.mxu0 %v676
      %744 = vmatpush1.msra.mxu0 %v675
      %745 = vmatprep.subr.mxu0 %v681
      %746 = vmatpush1.msra.mxu0 %v680
      %747 = vmatprep.subr.mxu0 %v686
      %748 = vmatpush1.msra.mxu0 %v685
      %749 = vmatprep.subr.mxu0 0.0
      %750 = vmatpush1.msra.mxu0 0.0
      %751 = vmatprep.subr.mxu0 0.0
      %752 = vmatpush1.msra.mxu0 0.0
      %753 = vmatprep.subr.mxu0 0.0
      %754 = vmatpush1.msra.mxu0 0.0
      %755 = vmatprep.subr.mxu0 0.0
      %756 = vmatpush1.msra.mxu0 0.0
      %757 = vmatprep.subr.mxu0 0.0
      %758 = vmatpush1.msra.mxu0 0.0
      %759 = vmatprep.subr.mxu0 0.0
      %760 = vmatpush1.msra.mxu0 0.0
      %761 = vmatprep.subr.mxu0 0.0
      %762 = vmatpush1.msra.mxu0 0.0
      %763 = vmatprep.subr.mxu0 0.0
      %764 = vmatpush1.msra.mxu0 0.0
      %765 = vmatprep.subr.mxu0 0.0
      %766 = vmatpush1.msra.mxu0 0.0
      %767 = vmatprep.subr.mxu0 0.0
      %768 = vmatpush1.msra.mxu0 0.0
      %769 = vmatprep.subr.mxu0 0.0
      %770 = vmatpush1.msra.mxu0 0.0
      %771 = vmatprep.subr.mxu0 0.0
      %772 = vmatpush1.msra.mxu0 0.0
      %773 = vmatprep.subr.mxu0 0.0
      %774 = vmatpush1.msra.mxu0 0.0
      %775 = vmatprep.subr.mxu0 0.0
      %776 = vmatpush1.msra.mxu0 0.0
      %777 = vmatprep.subr.mxu0 0.0
      %778 = vmatpush1.msra.mxu0 0.0
      %779 = vmatprep.subr.mxu0 0.0
      %780 = vmatpush1.msra.mxu0 0.0
      %781 = vmatprep.mubr.f32.mxu0 0.0
      %782 = vmatmul.mubr.f32.gmra.mrb[0].mxu0 %v578
      %v783 = vpop.f32.mrb[0].mxu0
      %v784 = vadd.f32 %v695, %v783
      %v785 = vpop.f32.mrb[0].mxu0
      %v786 = vadd.f32 %v699, %v785
      %787 = vmatprep.mubr.f32.mxu0 0.0
      %788 = vmatmul.mubr.f32.gmra.mrb[0].mxu0 %v579
      %v789 = vpop.f32.mrb[0].mxu0
      %v790 = vadd.f32 %v695, %v789
      %v791 = vpop.f32.mrb[0].mxu0
      %v792 = vadd.f32 %v699, %v791
      %793 = vmatprep.mubr.f32.mxu0 0.0
      %794 = vmatmul.mubr.f32.gmra.mrb[0].mxu0 %v580
      %v795 = vpop.f32.mrb[0].mxu0
      %v796 = vadd.f32 %v695, %v795
      %v797 = vpop.f32.mrb[0].mxu0
      %v798 = vadd.f32 %v699, %v797
      %799 = vmatprep.mubr.f32.mxu0 0.0
      %800 = vmatmul.mubr.f32.gmra.mrb[0].mxu0 %v581
      %v801 = vpop.f32.mrb[0].mxu0
      %v802 = vadd.f32 %v695, %v801
      %v803 = vpop.f32.mrb[0].mxu0
      %v804 = vadd.f32 %v699, %v803
      %805 = vmatprep.mubr.f32.mxu0 0.0
      %806 = vmatmul.mubr.f32.gmra.mrb[0].mxu0 %v582
      %v807 = vpop.f32.mrb[0].mxu0
      %v808 = vadd.f32 %v695, %v807
      %v809 = vpop.f32.mrb[0].mxu0
      %v810 = vadd.f32 %v699, %v809
      %811 = vmatprep.mubr.f32.mxu0 0.0
      %812 = vmatmul.mubr.f32.gmra.mrb[0].mxu0 %v583
      %v813 = vpop.f32.mrb[0].mxu0
      %v814 = vadd.f32 %v695, %v813
      %v815 = vpop.f32.mrb[0].mxu0
      %v816 = vadd.f32 %v699, %v815
      %817 = vmatprep.mubr.f32.mxu0 0.0
      %818 = vmatmul.mubr.f32.gmra.mrb[0].mxu0 %v584
      %v819 = vpop.f32.mrb[0].mxu0
      %v820 = vadd.f32 %v695, %v819
      %v821 = vpop.f32.mrb[0].mxu0
      %v822 = vadd.f32 %v699, %v821
      %823 = vmatprep.mubr.f32.mxu0 0.0
      %824 = vmatmul.mubr.f32.gmra.mrb[0].mxu0 %v585
      %v825 = vpop.f32.mrb[0].mxu0
      %v826 = vadd.f32 %v695, %v825
      %v827 = vpop.f32.mrb[0].mxu0
      %v828 = vadd.f32 %v699, %v827
      %829 = vmatprep.mubr.f32.mxu0 0.0
      %830 = vmatmul.mubr.f32.gmra.mrb[0].mxu0 %v586
      %v831 = vpop.f32.mrb[0].mxu0
      %v832 = vadd.f32 %v695, %v831
      %v833 = vpop.f32.mrb[0].mxu0
      %v834 = vadd.f32 %v699, %v833
      %835 = vmatprep.mubr.f32.mxu0 0.0
      %836 = vmatmul.mubr.f32.gmra.mrb[0].mxu0 %v587
      %v837 = vpop.f32.mrb[0].mxu0
      %v838 = vadd.f32 %v695, %v837
      %v839 = vpop.f32.mrb[0].mxu0
      %v840 = vadd.f32 %v699, %v839
      %841 = vmatprep.mubr.f32.mxu0 0.0
      %842 = vmatmul.mubr.f32.gmra.mrb[0].mxu0 %v588
      %v843 = vpop.f32.mrb[0].mxu0
      %v844 = vadd.f32 %v695, %v843
      %v845 = vpop.f32.mrb[0].mxu0
      %v846 = vadd.f32 %v699, %v845
      %847 = vmatprep.mubr.f32.mxu0 0.0
      %848 = vmatmul.mubr.f32.gmra.mrb[0].mxu0 %v589
      %v849 = vpop.f32.mrb[0].mxu0
      %v850 = vadd.f32 %v695, %v849
      %v851 = vpop.f32.mrb[0].mxu0
      %v852 = vadd.f32 %v699, %v851
      %853 = vmatprep.mubr.f32.mxu0 0.0
      %854 = vmatmul.mubr.f32.gmra.mrb[0].mxu0 %v590
      %v855 = vpop.f32.mrb[0].mxu0
      %v856 = vadd.f32 %v695, %v855
      %v857 = vpop.f32.mrb[0].mxu0
      %v858 = vadd.f32 %v699, %v857
      %859 = vmatprep.mubr.f32.mxu0 0.0
      %860 = vmatmul.mubr.f32.gmra.mrb[0].mxu0 %v591
      %v861 = vpop.f32.mrb[0].mxu0
      %v862 = vadd.f32 %v695, %v861
      %v863 = vpop.f32.mrb[0].mxu0
      %v864 = vadd.f32 %v699, %v863
      %865 = vmatprep.mubr.f32.mxu0 0.0
      %866 = vmatmul.mubr.f32.gmra.mrb[0].mxu0 %v592
      %v867 = vpop.f32.mrb[0].mxu0
      %v868 = vadd.f32 %v695, %v867
      %v869 = vpop.f32.mrb[0].mxu0
      %v870 = vadd.f32 %v699, %v869
      %871 = vmatprep.mubr.f32.mxu0 0.0
      %872 = vmatmul.mubr.f32.gmra.mrb[0].mxu0 %v593
      %v873 = vpop.f32.mrb[0].mxu0
      %v874 = vadd.f32 %v695, %v873
      %v875 = vpop.f32.mrb[0].mxu0
      %v876 = vadd.f32 %v699, %v875
      %877 = vdwg.mxu0
      %878 = vmatprep.subr.mxu0 %v613
      %879 = vmatpush1.msra.mxu0 %v612
      %880 = vmatprep.subr.mxu0 %v618
      %881 = vmatpush1.msra.mxu0 %v617
      %882 = vmatprep.subr.mxu0 %v623
      %883 = vmatpush1.msra.mxu0 %v622
      %884 = vmatprep.subr.mxu0 %v628
      %885 = vmatpush1.msra.mxu0 %v627
      %886 = vmatprep.subr.mxu0 %v633
      %887 = vmatpush1.msra.mxu0 %v632
      %888 = vmatprep.subr.mxu0 %v638
      %889 = vmatpush1.msra.mxu0 %v637
      %890 = vmatprep.subr.mxu0 %v643
      %891 = vmatpush1.msra.mxu0 %v642
      %892 = vmatprep.subr.mxu0 %v648
      %893 = vmatpush1.msra.mxu0 %v647
      %894 = vmatprep.subr.mxu0 %v653
      %895 = vmatpush1.msra.mxu0 %v652
      %896 = vmatprep.subr.mxu0 %v658
      %897 = vmatpush1.msra.mxu0 %v657
      %898 = vmatprep.subr.mxu0 %v663
      %899 = vmatpush1.msra.mxu0 %v662
      %900 = vmatprep.subr.mxu0 %v668
      %901 = vmatpush1.msra.mxu0 %v667
      %902 = vmatprep.subr.mxu0 %v673
      %903 = vmatpush1.msra.mxu0 %v672
      %904 = vmatprep.subr.mxu0 %v678
      %905 = vmatpush1.msra.mxu0 %v677
      %906 = vmatprep.subr.mxu0 %v683
      %907 = vmatpush1.msra.mxu0 %v682
      %908 = vmatprep.subr.mxu0 %v688
      %909 = vmatpush1.msra.mxu0 %v687
      %910 = vmatprep.subr.mxu0 0.0
      %911 = vmatpush1.msra.mxu0 0.0
      %912 = vmatprep.subr.mxu0 0.0
      %913 = vmatpush1.msra.mxu0 0.0
      %914 = vmatprep.subr.mxu0 0.0
      %915 = vmatpush1.msra.mxu0 0.0
      %916 = vmatprep.subr.mxu0 0.0
      %917 = vmatpush1.msra.mxu0 0.0
      %918 = vmatprep.subr.mxu0 0.0
      %919 = vmatpush1.msra.mxu0 0.0
      %920 = vmatprep.subr.mxu0 0.0
      %921 = vmatpush1.msra.mxu0 0.0
      %922 = vmatprep.subr.mxu0 0.0
      %923 = vmatpush1.msra.mxu0 0.0
      %924 = vmatprep.subr.mxu0 0.0
      %925 = vmatpush1.msra.mxu0 0.0
      %926 = vmatprep.subr.mxu0 0.0
      %927 = vmatpush1.msra.mxu0 0.0
      %928 = vmatprep.subr.mxu0 0.0
      %929 = vmatpush1.msra.mxu0 0.0
      %930 = vmatprep.subr.mxu0 0.0
      %931 = vmatpush1.msra.mxu0 0.0
      %932 = vmatprep.subr.mxu0 0.0
      %933 = vmatpush1.msra.mxu0 0.0
      %934 = vmatprep.subr.mxu0 0.0
      %935 = vmatpush1.msra.mxu0 0.0
      %936 = vmatprep.subr.mxu0 0.0
      %937 = vmatpush1.msra.mxu0 0.0
      %938 = vmatprep.subr.mxu0 0.0
      %939 = vmatpush1.msra.mxu0 0.0
      %940 = vmatprep.subr.mxu0 0.0
      %941 = vmatpush1.msra.mxu0 0.0
      %942 = vmatprep.mubr.f32.mxu0 0.0
      %943 = vmatmul.mubr.f32.gmra.mrb[0].mxu0 %v578
      %v944 = vpop.f32.mrb[0].mxu0
      %v945 = vadd.f32 %v703, %v944
      %v946 = vpop.f32.mrb[0].mxu0
      %v947 = vadd.f32 %v707, %v946
      %948 = vmatprep.mubr.f32.mxu0 0.0
      %949 = vmatmul.mubr.f32.gmra.mrb[0].mxu0 %v579
      %v950 = vpop.f32.mrb[0].mxu0
      %v951 = vadd.f32 %v703, %v950
      %v952 = vpop.f32.mrb[0].mxu0
      %v953 = vadd.f32 %v707, %v952
      %954 = vmatprep.mubr.f32.mxu0 0.0
      %955 = vmatmul.mubr.f32.gmra.mrb[0].mxu0 %v580
      %v956 = vpop.f32.mrb[0].mxu0
      %v957 = vadd.f32 %v703, %v956
      %v958 = vpop.f32.mrb[0].mxu0
      %v959 = vadd.f32 %v707, %v958
      %960 = vmatprep.mubr.f32.mxu0 0.0
      %961 = vmatmul.mubr.f32.gmra.mrb[0].mxu0 %v581
      %v962 = vpop.f32.mrb[0].mxu0
      %v963 = vadd.f32 %v703, %v962
      %v964 = vpop.f32.mrb[0].mxu0
      %v965 = vadd.f32 %v707, %v964
      %966 = vmatprep.mubr.f32.mxu0 0.0
      %967 = vmatmul.mubr.f32.gmra.mrb[0].mxu0 %v582
      %v968 = vpop.f32.mrb[0].mxu0
      %v969 = vadd.f32 %v703, %v968
      %v970 = vpop.f32.mrb[0].mxu0
      %v971 = vadd.f32 %v707, %v970
      %972 = vmatprep.mubr.f32.mxu0 0.0
      %973 = vmatmul.mubr.f32.gmra.mrb[0].mxu0 %v583
      %v974 = vpop.f32.mrb[0].mxu0
      %v975 = vadd.f32 %v703, %v974
      %v976 = vpop.f32.mrb[0].mxu0
      %v977 = vadd.f32 %v707, %v976
      %978 = vmatprep.mubr.f32.mxu0 0.0
      %979 = vmatmul.mubr.f32.gmra.mrb[0].mxu0 %v584
      %v980 = vpop.f32.mrb[0].mxu0
      %v981 = vadd.f32 %v703, %v980
      %v982 = vpop.f32.mrb[0].mxu0
      %v983 = vadd.f32 %v707, %v982
      %984 = vmatprep.mubr.f32.mxu0 0.0
      %985 = vmatmul.mubr.f32.gmra.mrb[0].mxu0 %v585
      %v986 = vpop.f32.mrb[0].mxu0
      %v987 = vadd.f32 %v703, %v986
      %v988 = vpop.f32.mrb[0].mxu0
      %v989 = vadd.f32 %v707, %v988
      %990 = vmatprep.mubr.f32.mxu0 0.0
      %991 = vmatmul.mubr.f32.gmra.mrb[0].mxu0 %v586
      %v992 = vpop.f32.mrb[0].mxu0
      %v993 = vadd.f32 %v703, %v992
      %v994 = vpop.f32.mrb[0].mxu0
      %v995 = vadd.f32 %v707, %v994
      %996 = vmatprep.mubr.f32.mxu0 0.0
      %997 = vmatmul.mubr.f32.gmra.mrb[0].mxu0 %v587
      %v998 = vpop.f32.mrb[0].mxu0
      %v999 = vadd.f32 %v703, %v998
      %v1000 = vpop.f32.mrb[0].mxu0
      %v1001 = vadd.f32 %v707, %v1000
      %1002 = vmatprep.mubr.f32.mxu0 0.0
      %1003 = vmatmul.mubr.f32.gmra.mrb[0].mxu0 %v588
      %v1004 = vpop.f32.mrb[0].mxu0
      %v1005 = vadd.f32 %v703, %v1004
      %v1006 = vpop.f32.mrb[0].mxu0
      %v1007 = vadd.f32 %v707, %v1006
      %1008 = vmatprep.mubr.f32.mxu0 0.0
      %1009 = vmatmul.mubr.f32.gmra.mrb[0].mxu0 %v589
      %v1010 = vpop.f32.mrb[0].mxu0
      %v1011 = vadd.f32 %v703, %v1010
      %v1012 = vpop.f32.mrb[0].mxu0
      %v1013 = vadd.f32 %v707, %v1012
      %1014 = vmatprep.mubr.f32.mxu0 0.0
      %1015 = vmatmul.mubr.f32.gmra.mrb[0].mxu0 %v590
      %v1016 = vpop.f32.mrb[0].mxu0
      %v1017 = vadd.f32 %v703, %v1016
      %v1018 = vpop.f32.mrb[0].mxu0
      %v1019 = vadd.f32 %v707, %v1018
      %1020 = vmatprep.mubr.f32.mxu0 0.0
      %1021 = vmatmul.mubr.f32.gmra.mrb[0].mxu0 %v591
      %v1022 = vpop.f32.mrb[0].mxu0
      %v1023 = vadd.f32 %v703, %v1022
      %v1024 = vpop.f32.mrb[0].mxu0
      %v1025 = vadd.f32 %v707, %v1024
      %1026 = vmatprep.mubr.f32.mxu0 0.0
      %1027 = vmatmul.mubr.f32.gmra.mrb[0].mxu0 %v592
      %v1028 = vpop.f32.mrb[0].mxu0
      %v1029 = vadd.f32 %v703, %v1028
      %v1030 = vpop.f32.mrb[0].mxu0
      %v1031 = vadd.f32 %v707, %v1030
      %1032 = vmatprep.mubr.f32.mxu0 0.0
      %1033 = vmatmul.mubr.f32.gmra.mrb[0].mxu0 %v593
      %v1034 = vpop.f32.mrb[0].mxu0
      %v1035 = vadd.f32 %v703, %v1034
      %v1036 = vpop.f32.mrb[0].mxu0
      %v1037 = vadd.f32 %v707, %v1036
      %1038 = vdwg.mxu0
      %1039 = vmatprep.subr.mxu0 0.0
      %1040 = vmatpush1.msra.mxu0 %v614
      %1041 = vmatprep.subr.mxu0 0.0
      %1042 = vmatpush1.msra.mxu0 %v619
      %1043 = vmatprep.subr.mxu0 0.0
      %1044 = vmatpush1.msra.mxu0 %v624
      %1045 = vmatprep.subr.mxu0 0.0
      %1046 = vmatpush1.msra.mxu0 %v629
      %1047 = vmatprep.subr.mxu0 0.0
      %1048 = vmatpush1.msra.mxu0 %v634
      %1049 = vmatprep.subr.mxu0 0.0
      %1050 = vmatpush1.msra.mxu0 %v639
      %1051 = vmatprep.subr.mxu0 0.0
      %1052 = vmatpush1.msra.mxu0 %v644
      %1053 = vmatprep.subr.mxu0 0.0
      %1054 = vmatpush1.msra.mxu0 %v649
      %1055 = vmatprep.subr.mxu0 0.0
      %1056 = vmatpush1.msra.mxu0 %v654
      %1057 = vmatprep.subr.mxu0 0.0
      %1058 = vmatpush1.msra.mxu0 %v659
      %1059 = vmatprep.subr.mxu0 0.0
      %1060 = vmatpush1.msra.mxu0 %v664
      %1061 = vmatprep.subr.mxu0 0.0
      %1062 = vmatpush1.msra.mxu0 %v669
      %1063 = vmatprep.subr.mxu0 0.0
      %1064 = vmatpush1.msra.mxu0 %v674
      %1065 = vmatprep.subr.mxu0 0.0
      %1066 = vmatpush1.msra.mxu0 %v679
      %1067 = vmatprep.subr.mxu0 0.0
      %1068 = vmatpush1.msra.mxu0 %v684
      %1069 = vmatprep.subr.mxu0 0.0
      %1070 = vmatpush1.msra.mxu0 %v689
      %1071 = vmatprep.subr.mxu0 0.0
      %1072 = vmatpush1.msra.mxu0 0.0
      %1073 = vmatprep.subr.mxu0 0.0
      %1074 = vmatpush1.msra.mxu0 0.0
      %1075 = vmatprep.subr.mxu0 0.0
      %1076 = vmatpush1.msra.mxu0 0.0
      %1077 = vmatprep.subr.mxu0 0.0
      %1078 = vmatpush1.msra.mxu0 0.0
      %1079 = vmatprep.subr.mxu0 0.0
      %1080 = vmatpush1.msra.mxu0 0.0
      %1081 = vmatprep.subr.mxu0 0.0
      %1082 = vmatpush1.msra.mxu0 0.0
      %1083 = vmatprep.subr.mxu0 0.0
      %1084 = vmatpush1.msra.mxu0 0.0
      %1085 = vmatprep.subr.mxu0 0.0
      %1086 = vmatpush1.msra.mxu0 0.0
      %1087 = vmatprep.subr.mxu0 0.0
      %1088 = vmatpush1.msra.mxu0 0.0
      %1089 = vmatprep.subr.mxu0 0.0
      %1090 = vmatpush1.msra.mxu0 0.0
      %1091 = vmatprep.subr.mxu0 0.0
      %1092 = vmatpush1.msra.mxu0 0.0
      %1093 = vmatprep.subr.mxu0 0.0
      %1094 = vmatpush1.msra.mxu0 0.0
      %1095 = vmatprep.subr.mxu0 0.0
      %1096 = vmatpush1.msra.mxu0 0.0
      %1097 = vmatprep.subr.mxu0 0.0
      %1098 = vmatpush1.msra.mxu0 0.0
      %1099 = vmatprep.subr.mxu0 0.0
      %1100 = vmatpush1.msra.mxu0 0.0
      %1101 = vmatprep.subr.mxu0 0.0
      %1102 = vmatpush1.msra.mxu0 0.0
      %1103 = vmatprep.mubr.f32.mxu0 0.0
      %1104 = vmatmul.mubr.f32.gmra.mrb[0].mxu0 %v578
      %v1105 = vpop.f32.mrb[0].mxu0
      %v1106 = vadd.f32 %v711, %v1105
      %v1107 = vpop.f32.mrb[0].mxu0
      %1108 = vmatprep.mubr.f32.mxu0 0.0
      %1109 = vmatmul.mubr.f32.gmra.mrb[0].mxu0 %v579
      %v1110 = vpop.f32.mrb[0].mxu0
      %v1111 = vadd.f32 %v711, %v1110
      %v1112 = vpop.f32.mrb[0].mxu0
      %1113 = vmatprep.mubr.f32.mxu0 0.0
      %1114 = vmatmul.mubr.f32.gmra.mrb[0].mxu0 %v580
      %v1115 = vpop.f32.mrb[0].mxu0
      %v1116 = vadd.f32 %v711, %v1115
      %v1117 = vpop.f32.mrb[0].mxu0
      %1118 = vmatprep.mubr.f32.mxu0 0.0
      %1119 = vmatmul.mubr.f32.gmra.mrb[0].mxu0 %v581
      %v1120 = vpop.f32.mrb[0].mxu0
      %v1121 = vadd.f32 %v711, %v1120
      %v1122 = vpop.f32.mrb[0].mxu0
      %1123 = vmatprep.mubr.f32.mxu0 0.0
      %1124 = vmatmul.mubr.f32.gmra.mrb[0].mxu0 %v582
      %v1125 = vpop.f32.mrb[0].mxu0
      %v1126 = vadd.f32 %v711, %v1125
      %v1127 = vpop.f32.mrb[0].mxu0
      %1128 = vmatprep.mubr.f32.mxu0 0.0
      %1129 = vmatmul.mubr.f32.gmra.mrb[0].mxu0 %v583
      %v1130 = vpop.f32.mrb[0].mxu0
      %v1131 = vadd.f32 %v711, %v1130
      %v1132 = vpop.f32.mrb[0].mxu0
      %1133 = vmatprep.mubr.f32.mxu0 0.0
      %1134 = vmatmul.mubr.f32.gmra.mrb[0].mxu0 %v584
      %v1135 = vpop.f32.mrb[0].mxu0
      %v1136 = vadd.f32 %v711, %v1135
      %v1137 = vpop.f32.mrb[0].mxu0
      %1138 = vmatprep.mubr.f32.mxu0 0.0
      %1139 = vmatmul.mubr.f32.gmra.mrb[0].mxu0 %v585
      %v1140 = vpop.f32.mrb[0].mxu0
      %v1141 = vadd.f32 %v711, %v1140
      %v1142 = vpop.f32.mrb[0].mxu0
      %1143 = vmatprep.mubr.f32.mxu0 0.0
      %1144 = vmatmul.mubr.f32.gmra.mrb[0].mxu0 %v586
      %v1145 = vpop.f32.mrb[0].mxu0
      %v1146 = vadd.f32 %v711, %v1145
      %v1147 = vpop.f32.mrb[0].mxu0
      %1148 = vmatprep.mubr.f32.mxu0 0.0
      %1149 = vmatmul.mubr.f32.gmra.mrb[0].mxu0 %v587
      %v1150 = vpop.f32.mrb[0].mxu0
      %v1151 = vadd.f32 %v711, %v1150
      %v1152 = vpop.f32.mrb[0].mxu0
      %1153 = vmatprep.mubr.f32.mxu0 0.0
      %1154 = vmatmul.mubr.f32.gmra.mrb[0].mxu0 %v588
      %v1155 = vpop.f32.mrb[0].mxu0
      %v1156 = vadd.f32 %v711, %v1155
      %v1157 = vpop.f32.mrb[0].mxu0
      %1158 = vmatprep.mubr.f32.mxu0 0.0
      %1159 = vmatmul.mubr.f32.gmra.mrb[0].mxu0 %v589
      %v1160 = vpop.f32.mrb[0].mxu0
      %v1161 = vadd.f32 %v711, %v1160
      %v1162 = vpop.f32.mrb[0].mxu0
      %1163 = vmatprep.mubr.f32.mxu0 0.0
      %1164 = vmatmul.mubr.f32.gmra.mrb[0].mxu0 %v590
      %v1165 = vpop.f32.mrb[0].mxu0
      %v1166 = vadd.f32 %v711, %v1165
      %v1167 = vpop.f32.mrb[0].mxu0
      %1168 = vmatprep.mubr.f32.mxu0 0.0
      %1169 = vmatmul.mubr.f32.gmra.mrb[0].mxu0 %v591
      %v1170 = vpop.f32.mrb[0].mxu0
      %v1171 = vadd.f32 %v711, %v1170
      %v1172 = vpop.f32.mrb[0].mxu0
      %1173 = vmatprep.mubr.f32.mxu0 0.0
      %1174 = vmatmul.mubr.f32.gmra.mrb[0].mxu0 %v592
      %v1175 = vpop.f32.mrb[0].mxu0
      %v1176 = vadd.f32 %v711, %v1175
      %v1177 = vpop.f32.mrb[0].mxu0
      %1178 = vmatprep.mubr.f32.mxu0 0.0
      %1179 = vmatmul.mubr.f32.gmra.mrb[0].mxu0 %v593
      %v1180 = vpop.f32.mrb[0].mxu0
      %v1181 = vadd.f32 %v711, %v1180
      %v1182 = vpop.f32.mrb[0].mxu0
      %1183 = vdwg.mxu0
      %v1184 = vlaneseq
      %v1185 = vand.u32 %v1184, 127
      %vm1186 = vcmp.lt.s32.totalorder %v1185, 4
      %v1187 = vsel %vm1186, %v784, -1e+30
      %v1188 = vsel %vm1186, %v790, -1e+30
      %v1189 = vsel %vm1186, %v796, -1e+30
      %v1190 = vsel %vm1186, %v802, -1e+30
      %v1191 = vsel %vm1186, %v808, -1e+30
      %v1192 = vsel %vm1186, %v814, -1e+30
      %v1193 = vsel %vm1186, %v820, -1e+30
      %v1194 = vsel %vm1186, %v826, -1e+30
      %v1195 = vsel %vm1186, %v832, -1e+30
      %v1196 = vsel %vm1186, %v838, -1e+30
      %v1197 = vsel %vm1186, %v844, -1e+30
      %v1198 = vsel %vm1186, %v850, -1e+30
      %v1199 = vsel %vm1186, %v856, -1e+30
      %v1200 = vsel %vm1186, %v862, -1e+30
      %v1201 = vsel %vm1186, %v868, -1e+30
      %v1202 = vsel %vm1186, %v874, -1e+30
      %1203 = vmax.xlane.f32.xlu0 %v1187
      %v1204 = vpop.xlane.xlu0 %1203
      %1205 = vmax.xlane.f32.xlu0 %v1188
      %v1206 = vpop.xlane.xlu0 %1205
      %1207 = vmax.xlane.f32.xlu0 %v1189
      %v1208 = vpop.xlane.xlu0 %1207
      %1209 = vmax.xlane.f32.xlu0 %v1190
      %v1210 = vpop.xlane.xlu0 %1209
      %1211 = vmax.xlane.f32.xlu0 %v1191
      %v1212 = vpop.xlane.xlu0 %1211
      %1213 = vmax.xlane.f32.xlu0 %v1192
      %v1214 = vpop.xlane.xlu0 %1213
      %1215 = vmax.xlane.f32.xlu0 %v1193
      %v1216 = vpop.xlane.xlu0 %1215
      %1217 = vmax.xlane.f32.xlu0 %v1194
      %v1218 = vpop.xlane.xlu0 %1217
      %1219 = vmax.xlane.f32.xlu0 %v1195
      %v1220 = vpop.xlane.xlu0 %1219
      %1221 = vmax.xlane.f32.xlu0 %v1196
      %v1222 = vpop.xlane.xlu0 %1221
      %1223 = vmax.xlane.f32.xlu0 %v1197
      %v1224 = vpop.xlane.xlu0 %1223
      %1225 = vmax.xlane.f32.xlu0 %v1198
      %v1226 = vpop.xlane.xlu0 %1225
      %1227 = vmax.xlane.f32.xlu0 %v1199
      %v1228 = vpop.xlane.xlu0 %1227
      %1229 = vmax.xlane.f32.xlu0 %v1200
      %v1230 = vpop.xlane.xlu0 %1229
      %1231 = vmax.xlane.f32.xlu0 %v1201
      %v1232 = vpop.xlane.xlu0 %1231
      %1233 = vmax.xlane.f32.xlu0 %v1202
      %v1234 = vpop.xlane.xlu0 %1233
      %v1235 = vsub.f32 %v1187, %v1204
      %v1236 = vsub.f32 %v1188, %v1206
      %v1237 = vsub.f32 %v1189, %v1208
      %v1238 = vsub.f32 %v1190, %v1210
      %v1239 = vsub.f32 %v1191, %v1212
      %v1240 = vsub.f32 %v1192, %v1214
      %v1241 = vsub.f32 %v1193, %v1216
      %v1242 = vsub.f32 %v1194, %v1218
      %v1243 = vsub.f32 %v1195, %v1220
      %v1244 = vsub.f32 %v1196, %v1222
      %v1245 = vsub.f32 %v1197, %v1224
      %v1246 = vsub.f32 %v1198, %v1226
      %v1247 = vsub.f32 %v1199, %v1228
      %v1248 = vsub.f32 %v1200, %v1230
      %v1249 = vsub.f32 %v1201, %v1232
      %v1250 = vsub.f32 %v1202, %v1234
      %v1251 = vmul.f32 %v1235, 1.442695
      %v1252 = vpow.pop %v1251
      %v1253 = vmul.f32 %v1236, 1.442695
      %v1254 = vpow.pop %v1253
      %v1255 = vmul.f32 %v1237, 1.442695
      %v1256 = vpow.pop %v1255
      %v1257 = vmul.f32 %v1238, 1.442695
      %v1258 = vpow.pop %v1257
      %v1259 = vmul.f32 %v1239, 1.442695
      %v1260 = vpow.pop %v1259
      %v1261 = vmul.f32 %v1240, 1.442695
      %v1262 = vpow.pop %v1261
      %v1263 = vmul.f32 %v1241, 1.442695
      %v1264 = vpow.pop %v1263
      %v1265 = vmul.f32 %v1242, 1.442695
      %v1266 = vpow.pop %v1265
      %v1267 = vmul.f32 %v1243, 1.442695
      %v1268 = vpow.pop %v1267
      %v1269 = vmul.f32 %v1244, 1.442695
      %v1270 = vpow.pop %v1269
      %v1271 = vmul.f32 %v1245, 1.442695
      %v1272 = vpow.pop %v1271
      %v1273 = vmul.f32 %v1246, 1.442695
      %v1274 = vpow.pop %v1273
      %v1275 = vmul.f32 %v1247, 1.442695
      %v1276 = vpow.pop %v1275
      %v1277 = vmul.f32 %v1248, 1.442695
      %v1278 = vpow.pop %v1277
      %v1279 = vmul.f32 %v1249, 1.442695
      %v1280 = vpow.pop %v1279
      %v1281 = vmul.f32 %v1250, 1.442695
      %v1282 = vpow.pop %v1281
      %1283 = vadd.xlane.f32.xlu0 %v1252
      %v1284 = vpop.xlane.xlu0 %1283
      %1285 = vadd.xlane.f32.xlu0 %v1254
      %v1286 = vpop.xlane.xlu0 %1285
      %1287 = vadd.xlane.f32.xlu0 %v1256
      %v1288 = vpop.xlane.xlu0 %1287
      %1289 = vadd.xlane.f32.xlu0 %v1258
      %v1290 = vpop.xlane.xlu0 %1289
      %1291 = vadd.xlane.f32.xlu0 %v1260
      %v1292 = vpop.xlane.xlu0 %1291
      %1293 = vadd.xlane.f32.xlu0 %v1262
      %v1294 = vpop.xlane.xlu0 %1293
      %1295 = vadd.xlane.f32.xlu0 %v1264
      %v1296 = vpop.xlane.xlu0 %1295
      %1297 = vadd.xlane.f32.xlu0 %v1266
      %v1298 = vpop.xlane.xlu0 %1297
      %1299 = vadd.xlane.f32.xlu0 %v1268
      %v1300 = vpop.xlane.xlu0 %1299
      %1301 = vadd.xlane.f32.xlu0 %v1270
      %v1302 = vpop.xlane.xlu0 %1301
      %1303 = vadd.xlane.f32.xlu0 %v1272
      %v1304 = vpop.xlane.xlu0 %1303
      %1305 = vadd.xlane.f32.xlu0 %v1274
      %v1306 = vpop.xlane.xlu0 %1305
      %1307 = vadd.xlane.f32.xlu0 %v1276
      %v1308 = vpop.xlane.xlu0 %1307
      %1309 = vadd.xlane.f32.xlu0 %v1278
      %v1310 = vpop.xlane.xlu0 %1309
      %1311 = vadd.xlane.f32.xlu0 %v1280
      %v1312 = vpop.xlane.xlu0 %1311
      %1313 = vadd.xlane.f32.xlu0 %v1282
      %v1314 = vpop.xlane.xlu0 %1313
      %v1315 = vrcp.pop %v1284
      %v1316 = vrcp.pop %v1286
      %v1317 = vrcp.pop %v1288
      %v1318 = vrcp.pop %v1290
      %v1319 = vrcp.pop %v1292
      %v1320 = vrcp.pop %v1294
      %v1321 = vrcp.pop %v1296
      %v1322 = vrcp.pop %v1298
      %v1323 = vrcp.pop %v1300
      %v1324 = vrcp.pop %v1302
      %v1325 = vrcp.pop %v1304
      %v1326 = vrcp.pop %v1306
      %v1327 = vrcp.pop %v1308
      %v1328 = vrcp.pop %v1310
      %v1329 = vrcp.pop %v1312
      %v1330 = vrcp.pop %v1314
      %v1331 = vmul.f32 %v1252, %v1315
      %v1332 = vmul.f32 %v1254, %v1316
      %v1333 = vmul.f32 %v1256, %v1317
      %v1334 = vmul.f32 %v1258, %v1318
      %v1335 = vmul.f32 %v1260, %v1319
      %v1336 = vmul.f32 %v1262, %v1320
      %v1337 = vmul.f32 %v1264, %v1321
      %v1338 = vmul.f32 %v1266, %v1322
      %v1339 = vmul.f32 %v1268, %v1323
      %v1340 = vmul.f32 %v1270, %v1324
      %v1341 = vmul.f32 %v1272, %v1325
      %v1342 = vmul.f32 %v1274, %v1326
      %v1343 = vmul.f32 %v1276, %v1327
      %v1344 = vmul.f32 %v1278, %v1328
      %v1345 = vmul.f32 %v1280, %v1329
      %v1346 = vmul.f32 %v1282, %v1330
      %1347 = vst [vmem:[#allocation10] sm:$0xff] %v1331
      %1348 = vst [vmem:[#allocation10 + $0x8] sm:$0xff] %v1332
      %1349 = vst [vmem:[#allocation10 + $0x10] sm:$0xff] %v1333
      %1350 = vst [vmem:[#allocation10 + $0x18] sm:$0xff] %v1334
      %1351 = vst [vmem:[#allocation10 + $0x20] sm:$0xff] %v1335
      %1352 = vst [vmem:[#allocation10 + $0x28] sm:$0xff] %v1336
      %1353 = vst [vmem:[#allocation10 + $0x30] sm:$0xff] %v1337
      %1354 = vst [vmem:[#allocation10 + $0x38] sm:$0xff] %v1338
      %1355 = vst [vmem:[#allocation10 + $0x40] sm:$0xff] %v1339
      %1356 = vst [vmem:[#allocation10 + $0x48] sm:$0xff] %v1340
      %1357 = vst [vmem:[#allocation10 + $0x50] sm:$0xff] %v1341
      %1358 = vst [vmem:[#allocation10 + $0x58] sm:$0xff] %v1342
      %1359 = vst [vmem:[#allocation10 + $0x60] sm:$0xff] %v1343
      %1360 = vst [vmem:[#allocation10 + $0x68] sm:$0xff] %v1344
      %1361 = vst [vmem:[#allocation10 + $0x70] sm:$0xff] %v1345
      %1362 = vst [vmem:[#allocation10 + $0x78] sm:$0xff] %v1346
      %v1363 = vld [vmem:[%s1] sm:$0xff]
      %v1364 = vld [vmem:[%s1 + $0x8] sm:$0xff]
      %v1365 = vld [vmem:[%s1 + $0x10] sm:$0xff]
      %v1366 = vld [vmem:[%s1 + $0x18] sm:$0xff]
      %v1367 = vld [vmem:[%s1 + $0x20] sm:$0xff]
      %v1368 = vld [vmem:[%s1 + $0x28] sm:$0xff]
      %v1369 = vld [vmem:[%s1 + $0x30] sm:$0xff]
      %v1370 = vld [vmem:[%s1 + $0x38] sm:$0xff]
      %v1371 = vld [vmem:[%s1 + $0x40] sm:$0xff]
      %v1372 = vld [vmem:[%s1 + $0x48] sm:$0xff]
      %v1373 = vld [vmem:[%s1 + $0x50] sm:$0xff]
      %v1374 = vld [vmem:[%s1 + $0x58] sm:$0xff]
      %v1375 = vld [vmem:[%s1 + $0x60] sm:$0xff]
      %v1376 = vld [vmem:[%s1 + $0x68] sm:$0xff]
      %v1377 = vld [vmem:[%s1 + $0x70] sm:$0xff]
      %v1378 = vld [vmem:[%s1 + $0x78] sm:$0xff]
      %1395 = vrot.lane.b32.xlu0 %v1363, 2
      %v1396 = vpop.permute.xlu0 %1395
      %1397 = vrot.lane.b32.xlu0 %v1364, 2
      %v1398 = vpop.permute.xlu0 %1397
      %1399 = vrot.lane.b32.xlu0 %v1365, 2
      %v1400 = vpop.permute.xlu0 %1399
      %1401 = vrot.lane.b32.xlu0 %v1366, 2
      %v1402 = vpop.permute.xlu0 %1401
      %1403 = vrot.lane.b32.xlu0 %v1367, 2
      %v1404 = vpop.permute.xlu0 %1403
      %1405 = vrot.lane.b32.xlu0 %v1368, 2
      %v1406 = vpop.permute.xlu0 %1405
      %1407 = vrot.lane.b32.xlu0 %v1369, 2
      %v1408 = vpop.permute.xlu0 %1407
      %1409 = vrot.lane.b32.xlu0 %v1370, 2
      %v1410 = vpop.permute.xlu0 %1409
      %1411 = vrot.lane.b32.xlu0 %v1371, 2
      %v1412 = vpop.permute.xlu0 %1411
      %1413 = vrot.lane.b32.xlu0 %v1372, 2
      %v1414 = vpop.permute.xlu0 %1413
      %1415 = vrot.lane.b32.xlu0 %v1373, 2
      %v1416 = vpop.permute.xlu0 %1415
      %1417 = vrot.lane.b32.xlu0 %v1374, 2
      %v1418 = vpop.permute.xlu0 %1417
      %1419 = vrot.lane.b32.xlu0 %v1375, 2
      %v1420 = vpop.permute.xlu0 %1419
      %1421 = vrot.lane.b32.xlu0 %v1376, 2
      %v1422 = vpop.permute.xlu0 %1421
      %1423 = vrot.lane.b32.xlu0 %v1377, 2
      %v1424 = vpop.permute.xlu0 %1423
      %1425 = vrot.lane.b32.xlu0 %v1378, 2
      %v1426 = vpop.permute.xlu0 %1425
      %v1443 = vsub.f32 %v1363, %v1396
      %v1444 = vsub.f32 %v1364, %v1398
      %v1445 = vsub.f32 %v1365, %v1400
      %v1446 = vsub.f32 %v1366, %v1402
      %v1447 = vsub.f32 %v1367, %v1404
      %v1448 = vsub.f32 %v1368, %v1406
      %v1449 = vsub.f32 %v1369, %v1408
      %v1450 = vsub.f32 %v1370, %v1410
      %v1451 = vsub.f32 %v1371, %v1412
      %v1452 = vsub.f32 %v1372, %v1414
      %v1453 = vsub.f32 %v1373, %v1416
      %v1454 = vsub.f32 %v1374, %v1418
      %v1455 = vsub.f32 %v1375, %v1420
      %v1456 = vsub.f32 %v1376, %v1422
      %v1457 = vsub.f32 %v1377, %v1424
      %v1458 = vsub.f32 %v1378, %v1426
      %v1459 = vadd.f32 %v1443, 1.0
      %v1460 = vadd.f32 %v1444, 1.0
      %v1461 = vadd.f32 %v1445, 1.0
      %v1462 = vadd.f32 %v1446, 1.0
      %v1463 = vadd.f32 %v1447, 1.0
      %v1464 = vadd.f32 %v1448, 1.0
      %v1465 = vadd.f32 %v1449, 1.0
      %v1466 = vadd.f32 %v1450, 1.0
      %v1467 = vadd.f32 %v1451, 1.0
      %v1468 = vadd.f32 %v1452, 1.0
      %v1469 = vadd.f32 %v1453, 1.0
      %v1470 = vadd.f32 %v1454, 1.0
      %v1471 = vadd.f32 %v1455, 1.0
      %v1472 = vadd.f32 %v1456, 1.0
      %v1473 = vadd.f32 %v1457, 1.0
      %v1474 = vadd.f32 %v1458, 1.0
      %v1475 = vmul.f32 %v1459, 0.5
      %v1476 = vmul.f32 %v1460, 0.5
      %v1477 = vmul.f32 %v1461, 0.5
      %v1478 = vmul.f32 %v1462, 0.5
      %v1479 = vmul.f32 %v1463, 0.5
      %v1480 = vmul.f32 %v1464, 0.5
      %v1481 = vmul.f32 %v1465, 0.5
      %v1482 = vmul.f32 %v1466, 0.5
      %v1483 = vmul.f32 %v1467, 0.5
      %v1484 = vmul.f32 %v1468, 0.5
      %v1485 = vmul.f32 %v1469, 0.5
      %v1486 = vmul.f32 %v1470, 0.5
      %v1487 = vmul.f32 %v1471, 0.5
      %v1488 = vmul.f32 %v1472, 0.5
      %v1489 = vmul.f32 %v1473, 0.5
      %v1490 = vmul.f32 %v1474, 0.5
      %1507 = vrot.lane.b32.xlu0 %v1475, 126
      %v1508 = vpop.permute.xlu0 %1507
      %1509 = vrot.lane.b32.xlu0 %v1476, 126
      %v1510 = vpop.permute.xlu0 %1509
      %1511 = vrot.lane.b32.xlu0 %v1477, 126
      %v1512 = vpop.permute.xlu0 %1511
      %1513 = vrot.lane.b32.xlu0 %v1478, 126
      %v1514 = vpop.permute.xlu0 %1513
      %1515 = vrot.lane.b32.xlu0 %v1479, 126
      %v1516 = vpop.permute.xlu0 %1515
      %1517 = vrot.lane.b32.xlu0 %v1480, 126
      %v1518 = vpop.permute.xlu0 %1517
      %1519 = vrot.lane.b32.xlu0 %v1481, 126
      %v1520 = vpop.permute.xlu0 %1519
      %1521 = vrot.lane.b32.xlu0 %v1482, 126
      %v1522 = vpop.permute.xlu0 %1521
      %1523 = vrot.lane.b32.xlu0 %v1483, 126
      %v1524 = vpop.permute.xlu0 %1523
      %1525 = vrot.lane.b32.xlu0 %v1484, 126
      %v1526 = vpop.permute.xlu0 %1525
      %1527 = vrot.lane.b32.xlu0 %v1485, 126
      %v1528 = vpop.permute.xlu0 %1527
      %1529 = vrot.lane.b32.xlu0 %v1486, 126
      %v1530 = vpop.permute.xlu0 %1529
      %1531 = vrot.lane.b32.xlu0 %v1487, 126
      %v1532 = vpop.permute.xlu0 %1531
      %1533 = vrot.lane.b32.xlu0 %v1488, 126
      %v1534 = vpop.permute.xlu0 %1533
      %1535 = vrot.lane.b32.xlu0 %v1489, 126
      %v1536 = vpop.permute.xlu0 %1535
      %1537 = vrot.lane.b32.xlu0 %v1490, 126
      %v1538 = vpop.permute.xlu0 %1537
      %v1555 = vadd.f32 %v1363, %v1508
      %v1556 = vadd.f32 %v1364, %v1510
      %v1557 = vadd.f32 %v1365, %v1512
      %v1558 = vadd.f32 %v1366, %v1514
      %v1559 = vadd.f32 %v1367, %v1516
      %v1560 = vadd.f32 %v1368, %v1518
      %v1561 = vadd.f32 %v1369, %v1520
      %v1562 = vadd.f32 %v1370, %v1522
      %v1563 = vadd.f32 %v1371, %v1524
      %v1564 = vadd.f32 %v1372, %v1526
      %v1565 = vadd.f32 %v1373, %v1528
      %v1566 = vadd.f32 %v1374, %v1530
      %v1567 = vadd.f32 %v1375, %v1532
      %v1568 = vadd.f32 %v1376, %v1534
      %v1569 = vadd.f32 %v1377, %v1536
      %v1570 = vadd.f32 %v1378, %v1538
      %v1571 = vmul.f32 %v786, 0.1
      %v1572 = vmul.f32 %v792, 0.1
      %v1573 = vmul.f32 %v798, 0.1
      %v1574 = vmul.f32 %v804, 0.1
      %v1575 = vmul.f32 %v810, 0.1
      %v1576 = vmul.f32 %v816, 0.1
      %v1577 = vmul.f32 %v822, 0.1
      %v1578 = vmul.f32 %v828, 0.1
      %v1579 = vmul.f32 %v834, 0.1
      %v1580 = vmul.f32 %v840, 0.1
      %v1581 = vmul.f32 %v846, 0.1
      %v1582 = vmul.f32 %v852, 0.1
      %v1583 = vmul.f32 %v858, 0.1
      %v1584 = vmul.f32 %v864, 0.1
      %v1585 = vmul.f32 %v870, 0.1
      %v1586 = vmul.f32 %v876, 0.1
      %v1587 = vmul.f32 %v945, 0.1
      %v1588 = vmul.f32 %v951, 0.1
      %v1589 = vmul.f32 %v957, 0.1
      %v1590 = vmul.f32 %v963, 0.1
      %v1591 = vmul.f32 %v969, 0.1
      %v1592 = vmul.f32 %v975, 0.1
      %v1593 = vmul.f32 %v981, 0.1
      %v1594 = vmul.f32 %v987, 0.1
      %v1595 = vmul.f32 %v993, 0.1
      %v1596 = vmul.f32 %v999, 0.1
      %v1597 = vmul.f32 %v1005, 0.1
      %v1598 = vmul.f32 %v1011, 0.1
      %v1599 = vmul.f32 %v1017, 0.1
      %v1600 = vmul.f32 %v1023, 0.1
      %v1601 = vmul.f32 %v1029, 0.1
      %v1602 = vmul.f32 %v1035, 0.1
      %v1603 = vmul.f32 %v947, 0.2
      %v1604 = vmul.f32 %v953, 0.2
      %v1605 = vmul.f32 %v959, 0.2
      %v1606 = vmul.f32 %v965, 0.2
      %v1607 = vmul.f32 %v971, 0.2
      %v1608 = vmul.f32 %v977, 0.2
      %v1609 = vmul.f32 %v983, 0.2
      %v1610 = vmul.f32 %v989, 0.2
      %v1611 = vmul.f32 %v995, 0.2
      %v1612 = vmul.f32 %v1001, 0.2
      %v1613 = vmul.f32 %v1007, 0.2
      %v1614 = vmul.f32 %v1013, 0.2
      %v1615 = vmul.f32 %v1019, 0.2
      %v1616 = vmul.f32 %v1025, 0.2
      %v1617 = vmul.f32 %v1031, 0.2
      %v1618 = vmul.f32 %v1037, 0.2
      %v1619 = vmin.f32 %v1603, 4.1351666
      %v1620 = vmin.f32 %v1604, 4.1351666
      %v1621 = vmin.f32 %v1605, 4.1351666
      %v1622 = vmin.f32 %v1606, 4.1351666
      %v1623 = vmin.f32 %v1607, 4.1351666
      %v1624 = vmin.f32 %v1608, 4.1351666
      %v1625 = vmin.f32 %v1609, 4.1351666
      %v1626 = vmin.f32 %v1610, 4.1351666
      %v1627 = vmin.f32 %v1611, 4.1351666
      %v1628 = vmin.f32 %v1612, 4.1351666
      %v1629 = vmin.f32 %v1613, 4.1351666
      %v1630 = vmin.f32 %v1614, 4.1351666
      %v1631 = vmin.f32 %v1615, 4.1351666
      %v1632 = vmin.f32 %v1616, 4.1351666
      %v1633 = vmin.f32 %v1617, 4.1351666
      %v1634 = vmin.f32 %v1618, 4.1351666
      %v1635 = vmul.f32 %v1106, 0.2
      %v1636 = vmul.f32 %v1111, 0.2
      %v1637 = vmul.f32 %v1116, 0.2
      %v1638 = vmul.f32 %v1121, 0.2
      %v1639 = vmul.f32 %v1126, 0.2
      %v1640 = vmul.f32 %v1131, 0.2
      %v1641 = vmul.f32 %v1136, 0.2
      %v1642 = vmul.f32 %v1141, 0.2
      %v1643 = vmul.f32 %v1146, 0.2
      %v1644 = vmul.f32 %v1151, 0.2
      %v1645 = vmul.f32 %v1156, 0.2
      %v1646 = vmul.f32 %v1161, 0.2
      %v1647 = vmul.f32 %v1166, 0.2
      %v1648 = vmul.f32 %v1171, 0.2
      %v1649 = vmul.f32 %v1176, 0.2
      %v1650 = vmul.f32 %v1181, 0.2
      %v1651 = vmin.f32 %v1635, 4.1351666
      %v1652 = vmin.f32 %v1636, 4.1351666
      %v1653 = vmin.f32 %v1637, 4.1351666
      %v1654 = vmin.f32 %v1638, 4.1351666
      %v1655 = vmin.f32 %v1639, 4.1351666
      %v1656 = vmin.f32 %v1640, 4.1351666
      %v1657 = vmin.f32 %v1641, 4.1351666
      %v1658 = vmin.f32 %v1642, 4.1351666
      %v1659 = vmin.f32 %v1643, 4.1351666
      %v1660 = vmin.f32 %v1644, 4.1351666
      %v1661 = vmin.f32 %v1645, 4.1351666
      %v1662 = vmin.f32 %v1646, 4.1351666
      %v1663 = vmin.f32 %v1647, 4.1351666
      %v1664 = vmin.f32 %v1648, 4.1351666
      %v1665 = vmin.f32 %v1649, 4.1351666
      %v1666 = vmin.f32 %v1650, 4.1351666
      %1668 = vset.pattern.permute.xlu0 2
      %1669 = vperm.xlu0 %1668, %v1459
      %v1670 = vpop.permute.xlu0 %1669
      %1673 = vset.pattern.permute.xlu0 2
      %1674 = vperm.xlu0 %1673, %v1460
      %v1675 = vpop.permute.xlu0 %1674
      %1678 = vset.pattern.permute.xlu0 2
      %1679 = vperm.xlu0 %1678, %v1461
      %v1680 = vpop.permute.xlu0 %1679
      %1683 = vset.pattern.permute.xlu0 2
      %1684 = vperm.xlu0 %1683, %v1462
      %v1685 = vpop.permute.xlu0 %1684
      %1688 = vset.pattern.permute.xlu0 2
      %1689 = vperm.xlu0 %1688, %v1463
      %v1690 = vpop.permute.xlu0 %1689
      %1693 = vset.pattern.permute.xlu0 2
      %1694 = vperm.xlu0 %1693, %v1464
      %v1695 = vpop.permute.xlu0 %1694
      %1698 = vset.pattern.permute.xlu0 2
      %1699 = vperm.xlu0 %1698, %v1465
      %v1700 = vpop.permute.xlu0 %1699
      %1703 = vset.pattern.permute.xlu0 2
      %1704 = vperm.xlu0 %1703, %v1466
      %v1705 = vpop.permute.xlu0 %1704
      %1708 = vset.pattern.permute.xlu0 2
      %1709 = vperm.xlu0 %1708, %v1467
      %v1710 = vpop.permute.xlu0 %1709
      %1713 = vset.pattern.permute.xlu0 2
      %1714 = vperm.xlu0 %1713, %v1468
      %v1715 = vpop.permute.xlu0 %1714
      %1718 = vset.pattern.permute.xlu0 2
      %1719 = vperm.xlu0 %1718, %v1469
      %v1720 = vpop.permute.xlu0 %1719
      %1723 = vset.pattern.permute.xlu0 2
      %1724 = vperm.xlu0 %1723, %v1470
      %v1725 = vpop.permute.xlu0 %1724
      %1728 = vset.pattern.permute.xlu0 2
      %1729 = vperm.xlu0 %1728, %v1471
      %v1730 = vpop.permute.xlu0 %1729
      %1733 = vset.pattern.permute.xlu0 2
      %1734 = vperm.xlu0 %1733, %v1472
      %v1735 = vpop.permute.xlu0 %1734
      %1738 = vset.pattern.permute.xlu0 2
      %1739 = vperm.xlu0 %1738, %v1473
      %v1740 = vpop.permute.xlu0 %1739
      %1743 = vset.pattern.permute.xlu0 2
      %1744 = vperm.xlu0 %1743, %v1474
      %v1745 = vpop.permute.xlu0 %1744
      %v1747 = vmul.f32 %v1571, %v1670
      %v1748 = vmul.f32 %v1572, %v1675
      %v1749 = vmul.f32 %v1573, %v1680
      %v1750 = vmul.f32 %v1574, %v1685
      %v1751 = vmul.f32 %v1575, %v1690
      %v1752 = vmul.f32 %v1576, %v1695
      %v1753 = vmul.f32 %v1577, %v1700
      %v1754 = vmul.f32 %v1578, %v1705
      %v1755 = vmul.f32 %v1579, %v1710
      %v1756 = vmul.f32 %v1580, %v1715
      %v1757 = vmul.f32 %v1581, %v1720
      %v1758 = vmul.f32 %v1582, %v1725
      %v1759 = vmul.f32 %v1583, %v1730
      %v1760 = vmul.f32 %v1584, %v1735
      %v1761 = vmul.f32 %v1585, %v1740
      %v1762 = vmul.f32 %v1586, %v1745
      %1764 = vset.pattern.permute.xlu0 0
      %1765 = vperm.xlu0 %1764, %v1555
      %v1766 = vpop.permute.xlu0 %1765
      %1769 = vset.pattern.permute.xlu0 0
      %1770 = vperm.xlu0 %1769, %v1556
      %v1771 = vpop.permute.xlu0 %1770
      %1774 = vset.pattern.permute.xlu0 0
      %1775 = vperm.xlu0 %1774, %v1557
      %v1776 = vpop.permute.xlu0 %1775
      %1779 = vset.pattern.permute.xlu0 0
      %1780 = vperm.xlu0 %1779, %v1558
      %v1781 = vpop.permute.xlu0 %1780
      %1784 = vset.pattern.permute.xlu0 0
      %1785 = vperm.xlu0 %1784, %v1559
      %v1786 = vpop.permute.xlu0 %1785
      %1789 = vset.pattern.permute.xlu0 0
      %1790 = vperm.xlu0 %1789, %v1560
      %v1791 = vpop.permute.xlu0 %1790
      %1794 = vset.pattern.permute.xlu0 0
      %1795 = vperm.xlu0 %1794, %v1561
      %v1796 = vpop.permute.xlu0 %1795
      %1799 = vset.pattern.permute.xlu0 0
      %1800 = vperm.xlu0 %1799, %v1562
      %v1801 = vpop.permute.xlu0 %1800
      %1804 = vset.pattern.permute.xlu0 0
      %1805 = vperm.xlu0 %1804, %v1563
      %v1806 = vpop.permute.xlu0 %1805
      %1809 = vset.pattern.permute.xlu0 0
      %1810 = vperm.xlu0 %1809, %v1564
      %v1811 = vpop.permute.xlu0 %1810
      %1814 = vset.pattern.permute.xlu0 0
      %1815 = vperm.xlu0 %1814, %v1565
      %v1816 = vpop.permute.xlu0 %1815
      %1819 = vset.pattern.permute.xlu0 0
      %1820 = vperm.xlu0 %1819, %v1566
      %v1821 = vpop.permute.xlu0 %1820
      %1824 = vset.pattern.permute.xlu0 0
      %1825 = vperm.xlu0 %1824, %v1567
      %v1826 = vpop.permute.xlu0 %1825
      %1829 = vset.pattern.permute.xlu0 0
      %1830 = vperm.xlu0 %1829, %v1568
      %v1831 = vpop.permute.xlu0 %1830
      %1834 = vset.pattern.permute.xlu0 0
      %1835 = vperm.xlu0 %1834, %v1569
      %v1836 = vpop.permute.xlu0 %1835
      %1839 = vset.pattern.permute.xlu0 0
      %1840 = vperm.xlu0 %1839, %v1570
      %v1841 = vpop.permute.xlu0 %1840
      %v1843 = vadd.f32 %v1747, %v1766
      %v1844 = vadd.f32 %v1748, %v1771
      %v1845 = vadd.f32 %v1749, %v1776
      %v1846 = vadd.f32 %v1750, %v1781
      %v1847 = vadd.f32 %v1751, %v1786
      %v1848 = vadd.f32 %v1752, %v1791
      %v1849 = vadd.f32 %v1753, %v1796
      %v1850 = vadd.f32 %v1754, %v1801
      %v1851 = vadd.f32 %v1755, %v1806
      %v1852 = vadd.f32 %v1756, %v1811
      %v1853 = vadd.f32 %v1757, %v1816
      %v1854 = vadd.f32 %v1758, %v1821
      %v1855 = vadd.f32 %v1759, %v1826
      %v1856 = vadd.f32 %v1760, %v1831
      %v1857 = vadd.f32 %v1761, %v1836
      %v1858 = vadd.f32 %v1762, %v1841
      %1859 = vset.pattern.permute.xlu0 3
      %1860 = vperm.xlu0 %1859, %v1459
      %v1861 = vpop.permute.xlu0 %1860
      %1863 = vset.pattern.permute.xlu0 3
      %1864 = vperm.xlu0 %1863, %v1460
      %v1865 = vpop.permute.xlu0 %1864
      %1867 = vset.pattern.permute.xlu0 3
      %1868 = vperm.xlu0 %1867, %v1461
      %v1869 = vpop.permute.xlu0 %1868
      %1871 = vset.pattern.permute.xlu0 3
      %1872 = vperm.xlu0 %1871, %v1462
      %v1873 = vpop.permute.xlu0 %1872
      %1875 = vset.pattern.permute.xlu0 3
      %1876 = vperm.xlu0 %1875, %v1463
      %v1877 = vpop.permute.xlu0 %1876
      %1879 = vset.pattern.permute.xlu0 3
      %1880 = vperm.xlu0 %1879, %v1464
      %v1881 = vpop.permute.xlu0 %1880
      %1883 = vset.pattern.permute.xlu0 3
      %1884 = vperm.xlu0 %1883, %v1465
      %v1885 = vpop.permute.xlu0 %1884
      %1887 = vset.pattern.permute.xlu0 3
      %1888 = vperm.xlu0 %1887, %v1466
      %v1889 = vpop.permute.xlu0 %1888
      %1891 = vset.pattern.permute.xlu0 3
      %1892 = vperm.xlu0 %1891, %v1467
      %v1893 = vpop.permute.xlu0 %1892
      %1895 = vset.pattern.permute.xlu0 3
      %1896 = vperm.xlu0 %1895, %v1468
      %v1897 = vpop.permute.xlu0 %1896
      %1899 = vset.pattern.permute.xlu0 3
      %1900 = vperm.xlu0 %1899, %v1469
      %v1901 = vpop.permute.xlu0 %1900
      %1903 = vset.pattern.permute.xlu0 3
      %1904 = vperm.xlu0 %1903, %v1470
      %v1905 = vpop.permute.xlu0 %1904
      %1907 = vset.pattern.permute.xlu0 3
      %1908 = vperm.xlu0 %1907, %v1471
      %v1909 = vpop.permute.xlu0 %1908
      %1911 = vset.pattern.permute.xlu0 3
      %1912 = vperm.xlu0 %1911, %v1472
      %v1913 = vpop.permute.xlu0 %1912
      %1915 = vset.pattern.permute.xlu0 3
      %1916 = vperm.xlu0 %1915, %v1473
      %v1917 = vpop.permute.xlu0 %1916
      %1919 = vset.pattern.permute.xlu0 3
      %1920 = vperm.xlu0 %1919, %v1474
      %v1921 = vpop.permute.xlu0 %1920
      %v1923 = vmul.f32 %v1587, %v1861
      %v1924 = vmul.f32 %v1588, %v1865
      %v1925 = vmul.f32 %v1589, %v1869
      %v1926 = vmul.f32 %v1590, %v1873
      %v1927 = vmul.f32 %v1591, %v1877
      %v1928 = vmul.f32 %v1592, %v1881
      %v1929 = vmul.f32 %v1593, %v1885
      %v1930 = vmul.f32 %v1594, %v1889
      %v1931 = vmul.f32 %v1595, %v1893
      %v1932 = vmul.f32 %v1596, %v1897
      %v1933 = vmul.f32 %v1597, %v1901
      %v1934 = vmul.f32 %v1598, %v1905
      %v1935 = vmul.f32 %v1599, %v1909
      %v1936 = vmul.f32 %v1600, %v1913
      %v1937 = vmul.f32 %v1601, %v1917
      %v1938 = vmul.f32 %v1602, %v1921
      %1939 = vset.pattern.permute.xlu0 1
      %1940 = vperm.xlu0 %1939, %v1555
      %v1941 = vpop.permute.xlu0 %1940
      %1943 = vset.pattern.permute.xlu0 1
      %1944 = vperm.xlu0 %1943, %v1556
      %v1945 = vpop.permute.xlu0 %1944
      %1947 = vset.pattern.permute.xlu0 1
      %1948 = vperm.xlu0 %1947, %v1557
      %v1949 = vpop.permute.xlu0 %1948
      %1951 = vset.pattern.permute.xlu0 1
      %1952 = vperm.xlu0 %1951, %v1558
      %v1953 = vpop.permute.xlu0 %1952
      %1955 = vset.pattern.permute.xlu0 1
      %1956 = vperm.xlu0 %1955, %v1559
      %v1957 = vpop.permute.xlu0 %1956
      %1959 = vset.pattern.permute.xlu0 1
      %1960 = vperm.xlu0 %1959, %v1560
      %v1961 = vpop.permute.xlu0 %1960
      %1963 = vset.pattern.permute.xlu0 1
      %1964 = vperm.xlu0 %1963, %v1561
      %v1965 = vpop.permute.xlu0 %1964
      %1967 = vset.pattern.permute.xlu0 1
      %1968 = vperm.xlu0 %1967, %v1562
      %v1969 = vpop.permute.xlu0 %1968
      %1971 = vset.pattern.permute.xlu0 1
      %1972 = vperm.xlu0 %1971, %v1563
      %v1973 = vpop.permute.xlu0 %1972
      %1975 = vset.pattern.permute.xlu0 1
      %1976 = vperm.xlu0 %1975, %v1564
      %v1977 = vpop.permute.xlu0 %1976
      %1979 = vset.pattern.permute.xlu0 1
      %1980 = vperm.xlu0 %1979, %v1565
      %v1981 = vpop.permute.xlu0 %1980
      %1983 = vset.pattern.permute.xlu0 1
      %1984 = vperm.xlu0 %1983, %v1566
      %v1985 = vpop.permute.xlu0 %1984
      %1987 = vset.pattern.permute.xlu0 1
      %1988 = vperm.xlu0 %1987, %v1567
      %v1989 = vpop.permute.xlu0 %1988
      %1991 = vset.pattern.permute.xlu0 1
      %1992 = vperm.xlu0 %1991, %v1568
      %v1993 = vpop.permute.xlu0 %1992
      %1995 = vset.pattern.permute.xlu0 1
      %1996 = vperm.xlu0 %1995, %v1569
      %v1997 = vpop.permute.xlu0 %1996
      %1999 = vset.pattern.permute.xlu0 1
      %2000 = vperm.xlu0 %1999, %v1570
      %v2001 = vpop.permute.xlu0 %2000
      %v2003 = vadd.f32 %v1923, %v1941
      %v2004 = vadd.f32 %v1924, %v1945
      %v2005 = vadd.f32 %v1925, %v1949
      %v2006 = vadd.f32 %v1926, %v1953
      %v2007 = vadd.f32 %v1927, %v1957
      %v2008 = vadd.f32 %v1928, %v1961
      %v2009 = vadd.f32 %v1929, %v1965
      %v2010 = vadd.f32 %v1930, %v1969
      %v2011 = vadd.f32 %v1931, %v1973
      %v2012 = vadd.f32 %v1932, %v1977
      %v2013 = vadd.f32 %v1933, %v1981
      %v2014 = vadd.f32 %v1934, %v1985
      %v2015 = vadd.f32 %v1935, %v1989
      %v2016 = vadd.f32 %v1936, %v1993
      %v2017 = vadd.f32 %v1937, %v1997
      %v2018 = vadd.f32 %v1938, %v2001
      %v2019 = vmul.f32 %v1619, 1.442695
      %v2020 = vpow.pop %v2019
      %v2021 = vmul.f32 %v1620, 1.442695
      %v2022 = vpow.pop %v2021
      %v2023 = vmul.f32 %v1621, 1.442695
      %v2024 = vpow.pop %v2023
      %v2025 = vmul.f32 %v1622, 1.442695
      %v2026 = vpow.pop %v2025
      %v2027 = vmul.f32 %v1623, 1.442695
      %v2028 = vpow.pop %v2027
      %v2029 = vmul.f32 %v1624, 1.442695
      %v2030 = vpow.pop %v2029
      %v2031 = vmul.f32 %v1625, 1.442695
      %v2032 = vpow.pop %v2031
      %v2033 = vmul.f32 %v1626, 1.442695
      %v2034 = vpow.pop %v2033
      %v2035 = vmul.f32 %v1627, 1.442695
      %v2036 = vpow.pop %v2035
      %v2037 = vmul.f32 %v1628, 1.442695
      %v2038 = vpow.pop %v2037
      %v2039 = vmul.f32 %v1629, 1.442695
      %v2040 = vpow.pop %v2039
      %v2041 = vmul.f32 %v1630, 1.442695
      %v2042 = vpow.pop %v2041
      %v2043 = vmul.f32 %v1631, 1.442695
      %v2044 = vpow.pop %v2043
      %v2045 = vmul.f32 %v1632, 1.442695
      %v2046 = vpow.pop %v2045
      %v2047 = vmul.f32 %v1633, 1.442695
      %v2048 = vpow.pop %v2047
      %v2049 = vmul.f32 %v1634, 1.442695
      %v2050 = vpow.pop %v2049
      %v2051 = vmul.f32 %v2020, %v1670
      %v2052 = vmul.f32 %v2022, %v1675
      %v2053 = vmul.f32 %v2024, %v1680
      %v2054 = vmul.f32 %v2026, %v1685
      %v2055 = vmul.f32 %v2028, %v1690
      %v2056 = vmul.f32 %v2030, %v1695
      %v2057 = vmul.f32 %v2032, %v1700
      %v2058 = vmul.f32 %v2034, %v1705
      %v2059 = vmul.f32 %v2036, %v1710
      %v2060 = vmul.f32 %v2038, %v1715
      %v2061 = vmul.f32 %v2040, %v1720
      %v2062 = vmul.f32 %v2042, %v1725
      %v2063 = vmul.f32 %v2044, %v1730
      %v2064 = vmul.f32 %v2046, %v1735
      %v2065 = vmul.f32 %v2048, %v1740
      %v2066 = vmul.f32 %v2050, %v1745
      %v2067 = vmul.f32 %v1651, 1.442695
      %v2068 = vpow.pop %v2067
      %v2069 = vmul.f32 %v1652, 1.442695
      %v2070 = vpow.pop %v2069
      %v2071 = vmul.f32 %v1653, 1.442695
      %v2072 = vpow.pop %v2071
      %v2073 = vmul.f32 %v1654, 1.442695
      %v2074 = vpow.pop %v2073
      %v2075 = vmul.f32 %v1655, 1.442695
      %v2076 = vpow.pop %v2075
      %v2077 = vmul.f32 %v1656, 1.442695
      %v2078 = vpow.pop %v2077
      %v2079 = vmul.f32 %v1657, 1.442695
      %v2080 = vpow.pop %v2079
      %v2081 = vmul.f32 %v1658, 1.442695
      %v2082 = vpow.pop %v2081
      %v2083 = vmul.f32 %v1659, 1.442695
      %v2084 = vpow.pop %v2083
      %v2085 = vmul.f32 %v1660, 1.442695
      %v2086 = vpow.pop %v2085
      %v2087 = vmul.f32 %v1661, 1.442695
      %v2088 = vpow.pop %v2087
      %v2089 = vmul.f32 %v1662, 1.442695
      %v2090 = vpow.pop %v2089
      %v2091 = vmul.f32 %v1663, 1.442695
      %v2092 = vpow.pop %v2091
      %v2093 = vmul.f32 %v1664, 1.442695
      %v2094 = vpow.pop %v2093
      %v2095 = vmul.f32 %v1665, 1.442695
      %v2096 = vpow.pop %v2095
      %v2097 = vmul.f32 %v1666, 1.442695
      %v2098 = vpow.pop %v2097
      %v2099 = vmul.f32 %v2068, %v1861
      %v2100 = vmul.f32 %v2070, %v1865
      %v2101 = vmul.f32 %v2072, %v1869
      %v2102 = vmul.f32 %v2074, %v1873
      %v2103 = vmul.f32 %v2076, %v1877
      %v2104 = vmul.f32 %v2078, %v1881
      %v2105 = vmul.f32 %v2080, %v1885
      %v2106 = vmul.f32 %v2082, %v1889
      %v2107 = vmul.f32 %v2084, %v1893
      %v2108 = vmul.f32 %v2086, %v1897
      %v2109 = vmul.f32 %v2088, %v1901
      %v2110 = vmul.f32 %v2090, %v1905
      %v2111 = vmul.f32 %v2092, %v1909
      %v2112 = vmul.f32 %v2094, %v1913
      %v2113 = vmul.f32 %v2096, %v1917
      %v2114 = vmul.f32 %v2098, %v1921
      %v2115 = vmul.f32 %v2051, 0.5
      %v2116 = vmul.f32 %v2052, 0.5
      %v2117 = vmul.f32 %v2053, 0.5
      %v2118 = vmul.f32 %v2054, 0.5
      %v2119 = vmul.f32 %v2055, 0.5
      %v2120 = vmul.f32 %v2056, 0.5
      %v2121 = vmul.f32 %v2057, 0.5
      %v2122 = vmul.f32 %v2058, 0.5
      %v2123 = vmul.f32 %v2059, 0.5
      %v2124 = vmul.f32 %v2060, 0.5
      %v2125 = vmul.f32 %v2061, 0.5
      %v2126 = vmul.f32 %v2062, 0.5
      %v2127 = vmul.f32 %v2063, 0.5
      %v2128 = vmul.f32 %v2064, 0.5
      %v2129 = vmul.f32 %v2065, 0.5
      %v2130 = vmul.f32 %v2066, 0.5
      %v2131 = vsub.f32 %v1843, %v2115
      %v2132 = vsub.f32 %v1844, %v2116
      %v2133 = vsub.f32 %v1845, %v2117
      %v2134 = vsub.f32 %v1846, %v2118
      %v2135 = vsub.f32 %v1847, %v2119
      %v2136 = vsub.f32 %v1848, %v2120
      %v2137 = vsub.f32 %v1849, %v2121
      %v2138 = vsub.f32 %v1850, %v2122
      %v2139 = vsub.f32 %v1851, %v2123
      %v2140 = vsub.f32 %v1852, %v2124
      %v2141 = vsub.f32 %v1853, %v2125
      %v2142 = vsub.f32 %v1854, %v2126
      %v2143 = vsub.f32 %v1855, %v2127
      %v2144 = vsub.f32 %v1856, %v2128
      %v2145 = vsub.f32 %v1857, %v2129
      %v2146 = vsub.f32 %v1858, %v2130
      %2147 = vst [vmem:[#allocation12] sm:$0xff] %v2131
      %2148 = vst [vmem:[#allocation12 + $0x20] sm:$0xff] %v2132
      %2149 = vst [vmem:[#allocation12 + $0x40] sm:$0xff] %v2133
      %2150 = vst [vmem:[#allocation12 + $0x60] sm:$0xff] %v2134
      %2151 = vst [vmem:[#allocation12 + $0x80] sm:$0xff] %v2135
      %2152 = vst [vmem:[#allocation12 + $0xa0] sm:$0xff] %v2136
      %2153 = vst [vmem:[#allocation12 + $0xc0] sm:$0xff] %v2137
      %2154 = vst [vmem:[#allocation12 + $0xe0] sm:$0xff] %v2138
      %2155 = vst [vmem:[#allocation12 + $0x100] sm:$0xff] %v2139
      %2156 = vst [vmem:[#allocation12 + $0x120] sm:$0xff] %v2140
      %2157 = vst [vmem:[#allocation12 + $0x140] sm:$0xff] %v2141
      %2158 = vst [vmem:[#allocation12 + $0x160] sm:$0xff] %v2142
      %2159 = vst [vmem:[#allocation12 + $0x180] sm:$0xff] %v2143
      %2160 = vst [vmem:[#allocation12 + $0x1a0] sm:$0xff] %v2144
      %2161 = vst [vmem:[#allocation12 + $0x1c0] sm:$0xff] %v2145
      %2162 = vst [vmem:[#allocation12 + $0x1e0] sm:$0xff] %v2146
      %v2163 = vmul.f32 %v2099, 0.5
      %v2164 = vmul.f32 %v2100, 0.5
      %v2165 = vmul.f32 %v2101, 0.5
      %v2166 = vmul.f32 %v2102, 0.5
      %v2167 = vmul.f32 %v2103, 0.5
      %v2168 = vmul.f32 %v2104, 0.5
      %v2169 = vmul.f32 %v2105, 0.5
      %v2170 = vmul.f32 %v2106, 0.5
      %v2171 = vmul.f32 %v2107, 0.5
      %v2172 = vmul.f32 %v2108, 0.5
      %v2173 = vmul.f32 %v2109, 0.5
      %v2174 = vmul.f32 %v2110, 0.5
      %v2175 = vmul.f32 %v2111, 0.5
      %v2176 = vmul.f32 %v2112, 0.5
      %v2177 = vmul.f32 %v2113, 0.5
      %v2178 = vmul.f32 %v2114, 0.5
      %v2179 = vsub.f32 %v2003, %v2163
      %v2180 = vsub.f32 %v2004, %v2164
      %v2181 = vsub.f32 %v2005, %v2165
      %v2182 = vsub.f32 %v2006, %v2166
      %v2183 = vsub.f32 %v2007, %v2167
      %v2184 = vsub.f32 %v2008, %v2168
      %v2185 = vsub.f32 %v2009, %v2169
      %v2186 = vsub.f32 %v2010, %v2170
      %v2187 = vsub.f32 %v2011, %v2171
      %v2188 = vsub.f32 %v2012, %v2172
      %v2189 = vsub.f32 %v2013, %v2173
      %v2190 = vsub.f32 %v2014, %v2174
      %v2191 = vsub.f32 %v2015, %v2175
      %v2192 = vsub.f32 %v2016, %v2176
      %v2193 = vsub.f32 %v2017, %v2177
      %v2194 = vsub.f32 %v2018, %v2178
      %2195 = vst [vmem:[#allocation12 + $0x8] sm:$0xff] %v2179
      %2196 = vst [vmem:[#allocation12 + $0x28] sm:$0xff] %v2180
      %2197 = vst [vmem:[#allocation12 + $0x48] sm:$0xff] %v2181
      %2198 = vst [vmem:[#allocation12 + $0x68] sm:$0xff] %v2182
      %2199 = vst [vmem:[#allocation12 + $0x88] sm:$0xff] %v2183
      %2200 = vst [vmem:[#allocation12 + $0xa8] sm:$0xff] %v2184
      %2201 = vst [vmem:[#allocation12 + $0xc8] sm:$0xff] %v2185
      %2202 = vst [vmem:[#allocation12 + $0xe8] sm:$0xff] %v2186
      %2203 = vst [vmem:[#allocation12 + $0x108] sm:$0xff] %v2187
      %2204 = vst [vmem:[#allocation12 + $0x128] sm:$0xff] %v2188
      %2205 = vst [vmem:[#allocation12 + $0x148] sm:$0xff] %v2189
      %2206 = vst [vmem:[#allocation12 + $0x168] sm:$0xff] %v2190
      %2207 = vst [vmem:[#allocation12 + $0x188] sm:$0xff] %v2191
      %2208 = vst [vmem:[#allocation12 + $0x1a8] sm:$0xff] %v2192
      %2209 = vst [vmem:[#allocation12 + $0x1c8] sm:$0xff] %v2193
      %2210 = vst [vmem:[#allocation12 + $0x1e8] sm:$0xff] %v2194
      %v2211 = vadd.f32 %v1843, %v2115
      %v2212 = vadd.f32 %v1844, %v2116
      %v2213 = vadd.f32 %v1845, %v2117
      %v2214 = vadd.f32 %v1846, %v2118
      %v2215 = vadd.f32 %v1847, %v2119
      %v2216 = vadd.f32 %v1848, %v2120
      %v2217 = vadd.f32 %v1849, %v2121
      %v2218 = vadd.f32 %v1850, %v2122
      %v2219 = vadd.f32 %v1851, %v2123
      %v2220 = vadd.f32 %v1852, %v2124
      %v2221 = vadd.f32 %v1853, %v2125
      %v2222 = vadd.f32 %v1854, %v2126
      %v2223 = vadd.f32 %v1855, %v2127
      %v2224 = vadd.f32 %v1856, %v2128
      %v2225 = vadd.f32 %v1857, %v2129
      %v2226 = vadd.f32 %v1858, %v2130
      %v2227 = vsub.f32 %v2211, 1.0
      %v2228 = vsub.f32 %v2212, 1.0
      %v2229 = vsub.f32 %v2213, 1.0
      %v2230 = vsub.f32 %v2214, 1.0
      %v2231 = vsub.f32 %v2215, 1.0
      %v2232 = vsub.f32 %v2216, 1.0
      %v2233 = vsub.f32 %v2217, 1.0
      %v2234 = vsub.f32 %v2218, 1.0
      %v2235 = vsub.f32 %v2219, 1.0
      %v2236 = vsub.f32 %v2220, 1.0
      %v2237 = vsub.f32 %v2221, 1.0
      %v2238 = vsub.f32 %v2222, 1.0
      %v2239 = vsub.f32 %v2223, 1.0
      %v2240 = vsub.f32 %v2224, 1.0
      %v2241 = vsub.f32 %v2225, 1.0
      %v2242 = vsub.f32 %v2226, 1.0
      %2243 = vst [vmem:[#allocation12 + $0x10] sm:$0xff] %v2227
      %2244 = vst [vmem:[#allocation12 + $0x30] sm:$0xff] %v2228
      %2245 = vst [vmem:[#allocation12 + $0x50] sm:$0xff] %v2229
      %2246 = vst [vmem:[#allocation12 + $0x70] sm:$0xff] %v2230
      %2247 = vst [vmem:[#allocation12 + $0x90] sm:$0xff] %v2231
      %2248 = vst [vmem:[#allocation12 + $0xb0] sm:$0xff] %v2232
      %2249 = vst [vmem:[#allocation12 + $0xd0] sm:$0xff] %v2233
      %2250 = vst [vmem:[#allocation12 + $0xf0] sm:$0xff] %v2234
      %2251 = vst [vmem:[#allocation12 + $0x110] sm:$0xff] %v2235
      %2252 = vst [vmem:[#allocation12 + $0x130] sm:$0xff] %v2236
      %2253 = vst [vmem:[#allocation12 + $0x150] sm:$0xff] %v2237
      %2254 = vst [vmem:[#allocation12 + $0x170] sm:$0xff] %v2238
      %2255 = vst [vmem:[#allocation12 + $0x190] sm:$0xff] %v2239
      %2256 = vst [vmem:[#allocation12 + $0x1b0] sm:$0xff] %v2240
      %2257 = vst [vmem:[#allocation12 + $0x1d0] sm:$0xff] %v2241
      %2258 = vst [vmem:[#allocation12 + $0x1f0] sm:$0xff] %v2242
      %v2259 = vadd.f32 %v2003, %v2163
      %v2260 = vadd.f32 %v2004, %v2164
      %v2261 = vadd.f32 %v2005, %v2165
      %v2262 = vadd.f32 %v2006, %v2166
      %v2263 = vadd.f32 %v2007, %v2167
      %v2264 = vadd.f32 %v2008, %v2168
      %v2265 = vadd.f32 %v2009, %v2169
      %v2266 = vadd.f32 %v2010, %v2170
      %v2267 = vadd.f32 %v2011, %v2171
      %v2268 = vadd.f32 %v2012, %v2172
      %v2269 = vadd.f32 %v2013, %v2173
      %v2270 = vadd.f32 %v2014, %v2174
      %v2271 = vadd.f32 %v2015, %v2175
      %v2272 = vadd.f32 %v2016, %v2176
      %v2273 = vadd.f32 %v2017, %v2177
      %v2274 = vadd.f32 %v2018, %v2178
      %v2275 = vsub.f32 %v2259, 1.0
      %v2276 = vsub.f32 %v2260, 1.0
      %v2277 = vsub.f32 %v2261, 1.0
      %v2278 = vsub.f32 %v2262, 1.0
      %v2279 = vsub.f32 %v2263, 1.0
      %v2280 = vsub.f32 %v2264, 1.0
      %v2281 = vsub.f32 %v2265, 1.0
      %v2282 = vsub.f32 %v2266, 1.0
      %v2283 = vsub.f32 %v2267, 1.0
      %v2284 = vsub.f32 %v2268, 1.0
      %v2285 = vsub.f32 %v2269, 1.0
      %v2286 = vsub.f32 %v2270, 1.0
      %v2287 = vsub.f32 %v2271, 1.0
      %v2288 = vsub.f32 %v2272, 1.0
      %v2289 = vsub.f32 %v2273, 1.0
      %v2290 = vsub.f32 %v2274, 1.0
      %2291 = vst [vmem:[#allocation12 + $0x18] sm:$0xff] %v2275
      %2292 = vst [vmem:[#allocation12 + $0x38] sm:$0xff] %v2276
      %2293 = vst [vmem:[#allocation12 + $0x58] sm:$0xff] %v2277
      %2294 = vst [vmem:[#allocation12 + $0x78] sm:$0xff] %v2278
      %2295 = vst [vmem:[#allocation12 + $0x98] sm:$0xff] %v2279
      %2296 = vst [vmem:[#allocation12 + $0xb8] sm:$0xff] %v2280
      %2297 = vst [vmem:[#allocation12 + $0xd8] sm:$0xff] %v2281
      %2298 = vst [vmem:[#allocation12 + $0xf8] sm:$0xff] %v2282
      %2299 = vst [vmem:[#allocation12 + $0x118] sm:$0xff] %v2283
      %2300 = vst [vmem:[#allocation12 + $0x138] sm:$0xff] %v2284
      %2301 = vst [vmem:[#allocation12 + $0x158] sm:$0xff] %v2285
      %2302 = vst [vmem:[#allocation12 + $0x178] sm:$0xff] %v2286
      %2303 = vst [vmem:[#allocation12 + $0x198] sm:$0xff] %v2287
      %2304 = vst [vmem:[#allocation12 + $0x1b8] sm:$0xff] %v2288
      %2305 = vst [vmem:[#allocation12 + $0x1d8] sm:$0xff] %v2289
      %2306 = vst [vmem:[#allocation12 + $0x1f8] sm:$0xff] %v2290
    $region53: #{tpu_custom_call.1} parent=1 // pred_fallthru
      _
    // Predicated region
    $region54: #{tpu_custom_call.1} parent=1 // pred_check
      _
    $region55: #{tpu_custom_call.1} parent=1 // pred_check_branch
      %2308 = sbr.rel (0) target = $region57
    $region56: #{tpu_custom_call.1} parent=1 // pred_region
      %s2310 = ssub.s32 2048, 2048
      %2311 = vsyncadd [#allocation5], %s2310
      %s2312 = sshll.u32 [#allocation9], 4
      %s2313 = int_to_ptr.vmem [resolvable:$true] %s2312
      %2318 = dma.vmem_to_hbm [thread:$0]  %s2313, 2048, %s8, [#allocation5], 128, 128, 8
    $region57: #{tpu_custom_call.1} parent=1 // pred_fallthru
      _
    // Predicated region
    $region58: #{tpu_custom_call.1} parent=1 // pred_check
      _
    $region59: #{tpu_custom_call.1} parent=1 // pred_check_branch
      %2320 = sbr.rel (0) target = $region61
    $region60: #{tpu_custom_call.1} parent=1 // pred_region
      %s2322 = ssub.s32 2048, 2048
      %2323 = vsyncadd [#allocation11], %s2322
      %s2324 = sshll.u32 [#allocation10], 4
      %s2325 = int_to_ptr.vmem [resolvable:$true] %s2324
      %2330 = dma.vmem_to_hbm [thread:$0]  %s2325, 2048, %s9, [#allocation11], 128, 128, 8
    $region61: #{tpu_custom_call.1} parent=1 // pred_fallthru
      _
    // Predicated region
    $region62: #{tpu_custom_call.1} parent=1 // pred_check
      _
    $region63: #{tpu_custom_call.1} parent=1 // pred_check_branch
      %2332 = sbr.rel (0) target = $region65
    $region64: #{tpu_custom_call.1} parent=1 // pred_region
      %s2334 = ssub.s32 8192, 8192
      %2335 = vsyncadd [#allocation11], %s2334
      %s2336 = sshll.u32 [#allocation12], 4
      %s2337 = int_to_ptr.vmem [resolvable:$true] %s2336
      %2342 = dma.vmem_to_hbm [thread:$0]  %s2337, 8192, %s10, [#allocation11], 512, 512, 32
    $region65: #{tpu_custom_call.1} parent=1 // pred_fallthru
      _
    // Predicated region
    $region66: #{tpu_custom_call.1} parent=1 // pred_check
      _
    $region67: #{tpu_custom_call.1} parent=1 // pred_check_branch
      %2344 = sbr.rel (0) target = $region69
    $region68: #{tpu_custom_call.1} parent=1 // pred_region
      %2345 = dma.done [#allocation5], 2048
    $region69: #{tpu_custom_call.1} parent=1 // pred_fallthru
      _
    // Predicated region
    $region70: #{tpu_custom_call.1} parent=1 // pred_check
      _
    $region71: #{tpu_custom_call.1} parent=1 // pred_check_branch
      %2347 = sbr.rel (0) target = $region73
    $region72: #{tpu_custom_call.1} parent=1 // pred_region
      %2348 = dma.done [#allocation11], 2048
    $region73: #{tpu_custom_call.1} parent=1 // pred_fallthru
      _
    // Predicated region
    $region74: #{tpu_custom_call.1} parent=1 // pred_check
      _
    $region75: #{tpu_custom_call.1} parent=1 // pred_check_branch
      %2350 = sbr.rel (0) target = $region77
    $region76: #{tpu_custom_call.1} parent=1 // pred_region
      %2351 = dma.done [#allocation11], 8192
    $region77: #{tpu_custom_call.1} parent=1 // pred_fallthru
      _
    %2352 = vsyncpa [#allocation4], 1
    %2353 = vsyncpa [#allocation7], 1
    %2354 = vsyncpa [#allocation5], 1
    %2355 = vsyncpa [#allocation11], 1

</llo_original>
